<compile_context>
chip_gen: v6e
topology: v6e:2x2x1
jax: 0.10.0
libtpu: 0.0.40
codegen_flags: <defaults>
</compile_context>

<pallas_src>
import functools

import jax
import jax.numpy as jnp
from jax import lax
from jax.experimental import pallas as pl
from jax.experimental.pallas import tpu as pltpu

LN_EPS = 1e-5                 # PyTorch nn.LayerNorm default
_INV_SQRT2 = 0.7071067811865476


def _round_up(x, m):
    return ((x + m - 1) // m) * m


def _vmem_budget_bytes():
    """~80% of physical VMEM (v5e/v6e: 128 MiB -> ~102 MiB, v7x: 64 MiB -> ~51 MiB).

    Falls back to a conservative 64 MiB if the hardware query is unavailable.
    """
    cap = None
    try:
        info = pltpu.get_tpu_info()
        cap = getattr(info, "vmem_capacity_bytes", None)
    except Exception:
        cap = None
    if not cap or cap <= 0:
        cap = 64 * 1024 * 1024
    return int(cap * 0.8)


def _auto_tile_b(B, n_feat_p, n_embed_p, vmem_budget):
    """Pick the largest batch tile that fits the VMEM budget, preferring multiples of 256."""
    # Single-buffered resident operands (w1 bf16, w2 bf16, packed vectors f32).
    resident = (n_feat_p * n_embed_p * 2
                + n_embed_p * n_embed_p * 2
                + 8 * n_embed_p * 4)
    # Per batch-row bytes: double-buffered f32 x tile + double-buffered f32 out tile
    # + ~4 f32 temporaries (h / cent / activation) inside the kernel.
    per_row = 2 * n_feat_p * 4 + 2 * n_embed_p * 4 + 4 * n_embed_p * 4
    avail = vmem_budget - resident
    cap_rows = max(8, avail // per_row) if avail > per_row * 8 else 8
    tile = int(min(1024, cap_rows))
    if tile >= 256:
        tile = (tile // 256) * 256     # fill the 2x256x256 MXU M dim on v6e/v7x
    else:
        tile = max(8, (tile // 8) * 8)
    # Guarantee >= 2 grid steps so the "parallel" batch axis can shard across the two
    # v7x TensorCores and the x/out DMAs pipeline against compute.
    if B > 8:
        tile = min(tile, _round_up((B + 1) // 2, 8))
    return max(8, (tile // 8) * 8)


def _encoder_kernel(n_embed, use_tanh_gelu, x_ref, w1_ref, w2_ref, vec_ref, out_ref):
    """One batch tile: (Linear -> LayerNorm -> GELU) x 2, fully in VMEM."""
    n_embed_p = out_ref.shape[-1]
    inv_n = jnp.float32(1.0 / n_embed)

    # Mask of the real (unpadded) embed columns. Padded weight columns and padded
    # bias/gamma/beta entries are exactly zero (host-side invariant), so padded
    # activation lanes are already exactly 0 after the matmul+bias -- the mask is
    # only needed to keep the LayerNorm variance exact after mean subtraction.
    col = lax.broadcasted_iota(jnp.int32, (1, n_embed_p), 1)
    mask = (col < n_embed).astype(jnp.float32)

    vec = vec_ref[...]        # (8, n_embed_p) f32 rows: b1, g1, be1, b2, g2, be2, 0, 0

    def act(h):
        if use_tanh_gelu:
            # tanh approximation runs on the EUP (otherwise-idle slot); helps v5e most.
            return jax.nn.gelu(h, approximate=True)
        # Exact GELU (PyTorch nn.GELU default): 0.5*x*(1+erf(x/sqrt(2))).
        return 0.5 * h * (1.0 + lax.erf(h * jnp.float32(_INV_SQRT2)))

    def block(h_in, w_ref, b, g, be):
        # bf16 x bf16 MXU matmul with f32 accumulation.
        h = jnp.dot(h_in, w_ref[...], preferred_element_type=jnp.float32) + b
        mean = jnp.sum(h, axis=-1, keepdims=True) * inv_n
        cent = (h - mean) * mask
        var = jnp.sum(cent * cent, axis=-1, keepdims=True) * inv_n
        h = cent * lax.rsqrt(var + LN_EPS)
        h = h * g + be                       # padded gamma/beta are 0 -> pads stay 0
        return act(h)                        # Dropout = identity (eval mode)

    # x arrives f32 (single HBM read, no host-side pad/cast pre-pass); the bf16 cast
    # for the MXU is cheap VPU filler hidden under the matmul.
    h = block(x_ref[...].astype(jnp.bfloat16), w1_ref, vec[0:1], vec[1:2], vec[2:3])
    h = block(h.astype(jnp.bfloat16), w2_ref, vec[3:4], vec[4:5], vec[5:6])
    out_ref[...] = h.astype(out_ref.dtype)


def batch_encoder_mlp_forward(x, params, *, tile_b=None, use_tanh_gelu=False):
    """Forward pass of batch_encoder_mlp.

    x:      [B, n_feat] float32.
    params: dict of logical (unpadded, f32) weights:
              w1 [n_feat, n_embed], b1/g1/be1 [n_embed],
              w2 [n_embed, n_embed], b2/g2/be2 [n_embed].
    Returns (batch_embed [B, n_embed] f32, weight [n_feat] f32 of ones).
    """
    B, n_feat = x.shape
    n_embed = params["w1"].shape[1]

    n_feat_p = _round_up(n_feat, 128)
    n_embed_p = _round_up(n_embed, 128)

    vmem_budget = _vmem_budget_bytes()
    if tile_b is None:
        tile_b = _auto_tile_b(B, n_feat_p, n_embed_p, vmem_budget)
    assert tile_b % 8 == 0, "tile_b must be a multiple of the 8-row sublane tile"
    # Even for an explicit tile_b, keep >= 2 grid steps (v7x dual-TC + pipelining).
    if B > 8:
        tile_b = min(tile_b, _round_up((B + 1) // 2, 8))

    B_p = pl.cdiv(B, tile_b) * tile_b
    grid = (B_p // tile_b,)

    # ---- host-side padding / packing ----
    # Fast path: no pad copy when already aligned; x stays f32 (cast to bf16 in-kernel).
    if B_p == B and n_feat_p == n_feat:
        x_p = x
    else:
        x_p = jnp.pad(x, ((0, B_p - B), (0, n_feat_p - n_feat)))
    # INVARIANT (relied on by the kernel): all padded weight/bias/gamma/beta entries
    # are exactly zero -- jnp.pad's default constant 0 guarantees this.
    w1_p = jnp.pad(params["w1"],
                   ((0, n_feat_p - n_feat), (0, n_embed_p - n_embed))).astype(jnp.bfloat16)
    w2_p = jnp.pad(params["w2"],
                   ((0, n_embed_p - n_embed), (0, n_embed_p - n_embed))).astype(jnp.bfloat16)
    pad_v = lambda v: jnp.pad(v.astype(jnp.float32), (0, n_embed_p - n_embed))
    zero_v = jnp.zeros((n_embed_p,), jnp.float32)
    vecs = jnp.stack([pad_v(params["b1"]), pad_v(params["g1"]), pad_v(params["be1"]),
                      pad_v(params["b2"]), pad_v(params["g2"]), pad_v(params["be2"]),
                      zero_v, zero_v])                         # (8, n_embed_p)

    # VMEM footprint: double-buffered x/out tiles, single-buffered resident weights,
    # f32 temporaries.  Modest 1.25x headroom, capped at the generation-aware budget.
    vmem_need = (2 * tile_b * n_feat_p * 4          # x tile, f32, 2 buffers
                 + 2 * tile_b * n_embed_p * 4       # out tile, f32, 2 buffers
                 + n_feat_p * n_embed_p * 2         # w1 (bf16, single-buffered)
                 + n_embed_p * n_embed_p * 2        # w2 (bf16, single-buffered)
                 + 8 * n_embed_p * 4                # packed bias/gamma/beta (single-buffered)
                 + 4 * tile_b * n_embed_p * 4)      # in-kernel f32 temporaries
    vmem_limit = int(min(max(int(1.25 * vmem_need), 16 * 1024 * 1024), vmem_budget))

    kernel = functools.partial(_encoder_kernel, n_embed, use_tanh_gelu)

    embed_p = pl.pallas_call(
        kernel,
        out_shape=jax.ShapeDtypeStruct((B_p, n_embed_p), x.dtype),
        grid_spec=pltpu.PrefetchScalarGridSpec(
            num_scalar_prefetch=0,
            grid=grid,
            in_specs=[
                pl.BlockSpec((tile_b, n_feat_p), lambda i: (i, 0)),      # x tile (pipelined)
                pl.BlockSpec((n_feat_p, n_embed_p), lambda i: (0, 0),    # w1: grid-invariant,
                             pipeline_mode=pl.Buffered(1)),              #   single-buffered
                pl.BlockSpec((n_embed_p, n_embed_p), lambda i: (0, 0),   # w2: grid-invariant
                             pipeline_mode=pl.Buffered(1)),
                pl.BlockSpec((8, n_embed_p), lambda i: (0, 0),           # packed b/gamma/beta
                             pipeline_mode=pl.Buffered(1)),
            ],
            out_specs=pl.BlockSpec((tile_b, n_embed_p), lambda i: (i, 0)),
        ),
        compiler_params=pltpu.CompilerParams(
            dimension_semantics=("parallel",),
            vmem_limit_bytes=vmem_limit),
    )(x_p, w1_p, w2_p, vecs)

    batch_embed = embed_p[:B, :n_embed]
    # forward() also returns torch.ones((n_feat,)) -- trivial, built in plain JAX.
    weight = jnp.ones((n_feat,), dtype=x.dtype)
    return batch_embed, weight


def init_params(key, n_feat, n_embed):
    """nn.Linear / nn.LayerNorm style init; Linear weights stored [in, out]."""
    k1, k2, k3, k4 = jax.random.split(key, 4)
    lim1 = 1.0 / (n_feat ** 0.5)
    lim2 = 1.0 / (n_embed ** 0.5)
    return {
        "w1": jax.random.uniform(k1, (n_feat, n_embed), jnp.float32, -lim1, lim1),
        "b1": jax.random.uniform(k2, (n_embed,), jnp.float32, -lim1, lim1),
        "g1": jnp.ones((n_embed,), jnp.float32),
        "be1": jnp.zeros((n_embed,), jnp.float32),
        "w2": jax.random.uniform(k3, (n_embed, n_embed), jnp.float32, -lim2, lim2),
        "b2": jax.random.uniform(k4, (n_embed,), jnp.float32, -lim2, lim2),
        "g2": jnp.ones((n_embed,), jnp.float32),
        "be2": jnp.zeros((n_embed,), jnp.float32),
    }


def _reference(x, p):
    """Pure-JAX reference mirroring the kernel's bf16-input / f32-accumulate numerics."""
    def bf16(a):
        return a.astype(jnp.bfloat16).astype(jnp.float32)

    def block(h, w, b, g, be):
        h = jnp.dot(bf16(h), bf16(w)) + b
        m = jnp.mean(h, axis=-1, keepdims=True)
        v = jnp.mean((h - m) ** 2, axis=-1, keepdims=True)
        h = (h - m) / jnp.sqrt(v + LN_EPS)
        h = h * g + be
        return 0.5 * h * (1.0 + lax.erf(h / jnp.sqrt(2.0)))

    h = block(x, p["w1"], p["b1"], p["g1"], p["be1"])
    h = block(h, p["w2"], p["b2"], p["g2"], p["be2"])
    return h


if __name__ == "__main__":
    key = jax.random.PRNGKey(0)
    k_x, k_p = jax.random.split(key)

    # Small but deliberately non-aligned shapes: exercises feature/embed padding, the
    # batch-remainder path, the auto tile_b selection (>=2 grid steps) and pipelining.
    B, n_feat, n_embed = 300, 20, 40
    x = jax.random.normal(k_x, (B, n_feat), dtype=jnp.float32)
    params = init_params(k_p, n_feat, n_embed)

    fwd = jax.jit(functools.partial(batch_encoder_mlp_forward, tile_b=None))
    embed, weight = fwd(x, params)
    embed = jax.block_until_ready(embed)
    weight = jax.block_until_ready(weight)

    ref = _reference(x, params)
    assert embed.shape == (B, n_embed)
    assert weight.shape == (n_feat,)
    assert bool(jnp.all(jnp.isfinite(embed)))
    max_err = float(jnp.max(jnp.abs(embed - ref)))
    assert jnp.allclose(embed, ref, atol=1e-3, rtol=1e-3), f"max abs err {max_err}"
    assert bool(jnp.all(weight == 1.0))

    print("KERNEL_OK")
</pallas_src>

<mosaic_0001>
module attributes {stable_mosaic.version = 11 : i64} {
  func.func @_encoder_kernel(%arg0: i32, %arg1: memref<152x128xf32, #tpu.memory_space<vmem>>, %arg2: memref<128x128xbf16, #tpu.memory_space<vmem>>, %arg3: memref<128x128xbf16, #tpu.memory_space<vmem>>, %arg4: memref<8x128xf32, #tpu.memory_space<vmem>>, %arg5: memref<152x128xf32, #tpu.memory_space<vmem>>) attributes {dimension_semantics = [#tpu.dimension_semantics<parallel>], iteration_bounds = array<i64: 2>, scalar_prefetch = 0 : i64, scratch_operands = 0 : i64, tpu.core_type = #tpu.core_type<tc>, window_params = [{transform_indices = @transform_0, window_bounds = array<i64: 152, 128>}, {pipeline_mode = #tpu.pipeline_mode<synchronous>, transform_indices = @transform_1, window_bounds = array<i64: 128, 128>}, {pipeline_mode = #tpu.pipeline_mode<synchronous>, transform_indices = @transform_2, window_bounds = array<i64: 128, 128>}, {pipeline_mode = #tpu.pipeline_mode<synchronous>, transform_indices = @transform_3, window_bounds = array<i64: 8, 128>}, {transform_indices = @transform_4, window_bounds = array<i64: 152, 128>}]} {
    %0 = tpu.iota {dimensions = array<i32: 1>} : vector<1x128xi32>
    %c40_i32 = arith.constant 40 : i32
    %1 = vector.broadcast %c40_i32 : i32 to vector<1x128xi32>
    %2 = arith.cmpi slt, %0, %1 : vector<1x128xi32>
    %3 = arith.extui %2 : vector<1x128xi1> to vector<1x128xi32>
    %4 = arith.sitofp %3 : vector<1x128xi32> to vector<1x128xf32>
    %c0 = arith.constant 0 : index
    %c0_0 = arith.constant 0 : index
    %5 = vector.load %arg4[%c0, %c0_0] : memref<8x128xf32, #tpu.memory_space<vmem>>, vector<8x128xf32>
    %c0_1 = arith.constant 0 : index
    %c0_2 = arith.constant 0 : index
    %6 = vector.load %arg1[%c0_1, %c0_2] : memref<152x128xf32, #tpu.memory_space<vmem>>, vector<152x128xf32>
    %7 = arith.truncf %6 : vector<152x128xf32> to vector<152x128xbf16>
    %8 = vector.extract_strided_slice %5 {offsets = [0, 0], sizes = [1, 128], strides = [1, 1]} : vector<8x128xf32> to vector<1x128xf32>
    %9 = vector.extract_strided_slice %5 {offsets = [1, 0], sizes = [1, 128], strides = [1, 1]} : vector<8x128xf32> to vector<1x128xf32>
    %10 = vector.extract_strided_slice %5 {offsets = [2, 0], sizes = [1, 128], strides = [1, 1]} : vector<8x128xf32> to vector<1x128xf32>
    %c0_3 = arith.constant 0 : index
    %c0_4 = arith.constant 0 : index
    %11 = vector.load %arg2[%c0_3, %c0_4] : memref<128x128xbf16, #tpu.memory_space<vmem>>, vector<128x128xbf16>
    %cst = arith.constant dense<0.000000e+00> : vector<152x128xf32>
    %12 = tpu.matmul %7, %11, %cst {dimension_numbers = #tpu.dot_dimension_numbers<[1], [0], [0], [1], [0, 0, 1, 1], [], []>} : vector<152x128xbf16>, vector<128x128xbf16>, vector<152x128xf32> -> vector<152x128xf32>
    %13 = vector.broadcast %8 : vector<1x128xf32> to vector<152x128xf32>
    %14 = arith.addf %12, %13 : vector<152x128xf32>
    %cst_5 = arith.constant dense<0.000000e+00> : vector<152xf32>
    %15 = vector.multi_reduction <add>, %14, %cst_5 [1] : vector<152x128xf32> to vector<152xf32>
    %16 = vector.shape_cast %15 : vector<152xf32> to vector<152x1xf32>
    %cst_6 = arith.constant 2.500000e-02 : f32
    %17 = vector.broadcast %cst_6 : f32 to vector<152x1xf32>
    %18 = arith.mulf %16, %17 : vector<152x1xf32>
    %19 = vector.broadcast %18 : vector<152x1xf32> to vector<152x128xf32>
    %20 = arith.subf %14, %19 : vector<152x128xf32>
    %21 = vector.broadcast %4 : vector<1x128xf32> to vector<152x128xf32>
    %22 = arith.mulf %20, %21 : vector<152x128xf32>
    %23 = arith.mulf %22, %22 : vector<152x128xf32>
    %cst_7 = arith.constant dense<0.000000e+00> : vector<152xf32>
    %24 = vector.multi_reduction <add>, %23, %cst_7 [1] : vector<152x128xf32> to vector<152xf32>
    %25 = vector.shape_cast %24 : vector<152xf32> to vector<152x1xf32>
    %cst_8 = arith.constant 2.500000e-02 : f32
    %26 = vector.broadcast %cst_8 : f32 to vector<152x1xf32>
    %27 = arith.mulf %25, %26 : vector<152x1xf32>
    %cst_9 = arith.constant 9.99999974E-6 : f32
    %28 = vector.broadcast %cst_9 : f32 to vector<152x1xf32>
    %29 = arith.addf %27, %28 : vector<152x1xf32>
    %30 = math.rsqrt %29 : vector<152x1xf32>
    %31 = vector.broadcast %30 : vector<152x1xf32> to vector<152x128xf32>
    %32 = arith.mulf %22, %31 : vector<152x128xf32>
    %33 = vector.broadcast %9 : vector<1x128xf32> to vector<152x128xf32>
    %34 = arith.mulf %32, %33 : vector<152x128xf32>
    %35 = vector.broadcast %10 : vector<1x128xf32> to vector<152x128xf32>
    %36 = arith.addf %34, %35 : vector<152x128xf32>
    %cst_10 = arith.constant 5.000000e-01 : f32
    %37 = vector.broadcast %cst_10 : f32 to vector<152x128xf32>
    %38 = arith.mulf %37, %36 : vector<152x128xf32>
    %cst_11 = arith.constant 0.707106769 : f32
    %39 = vector.broadcast %cst_11 : f32 to vector<152x128xf32>
    %40 = arith.mulf %36, %39 : vector<152x128xf32>
    %41 = math.erf %40 : vector<152x128xf32>
    %cst_12 = arith.constant 1.000000e+00 : f32
    %42 = vector.broadcast %cst_12 : f32 to vector<152x128xf32>
    %43 = arith.addf %42, %41 : vector<152x128xf32>
    %44 = arith.mulf %38, %43 : vector<152x128xf32>
    %45 = arith.truncf %44 : vector<152x128xf32> to vector<152x128xbf16>
    %46 = vector.extract_strided_slice %5 {offsets = [3, 0], sizes = [1, 128], strides = [1, 1]} : vector<8x128xf32> to vector<1x128xf32>
    %47 = vector.extract_strided_slice %5 {offsets = [4, 0], sizes = [1, 128], strides = [1, 1]} : vector<8x128xf32> to vector<1x128xf32>
    %48 = vector.extract_strided_slice %5 {offsets = [5, 0], sizes = [1, 128], strides = [1, 1]} : vector<8x128xf32> to vector<1x128xf32>
    %c0_13 = arith.constant 0 : index
    %c0_14 = arith.constant 0 : index
    %49 = vector.load %arg3[%c0_13, %c0_14] : memref<128x128xbf16, #tpu.memory_space<vmem>>, vector<128x128xbf16>
    %cst_15 = arith.constant dense<0.000000e+00> : vector<152x128xf32>
    %50 = tpu.matmul %45, %49, %cst_15 {dimension_numbers = #tpu.dot_dimension_numbers<[1], [0], [0], [1], [0, 0, 1, 1], [], []>} : vector<152x128xbf16>, vector<128x128xbf16>, vector<152x128xf32> -> vector<152x128xf32>
    %51 = vector.broadcast %46 : vector<1x128xf32> to vector<152x128xf32>
    %52 = arith.addf %50, %51 : vector<152x128xf32>
    %cst_16 = arith.constant dense<0.000000e+00> : vector<152xf32>
    %53 = vector.multi_reduction <add>, %52, %cst_16 [1] : vector<152x128xf32> to vector<152xf32>
    %54 = vector.shape_cast %53 : vector<152xf32> to vector<152x1xf32>
    %cst_17 = arith.constant 2.500000e-02 : f32
    %55 = vector.broadcast %cst_17 : f32 to vector<152x1xf32>
    %56 = arith.mulf %54, %55 : vector<152x1xf32>
    %57 = vector.broadcast %56 : vector<152x1xf32> to vector<152x128xf32>
    %58 = arith.subf %52, %57 : vector<152x128xf32>
    %59 = vector.broadcast %4 : vector<1x128xf32> to vector<152x128xf32>
    %60 = arith.mulf %58, %59 : vector<152x128xf32>
    %61 = arith.mulf %60, %60 : vector<152x128xf32>
    %cst_18 = arith.constant dense<0.000000e+00> : vector<152xf32>
    %62 = vector.multi_reduction <add>, %61, %cst_18 [1] : vector<152x128xf32> to vector<152xf32>
    %63 = vector.shape_cast %62 : vector<152xf32> to vector<152x1xf32>
    %cst_19 = arith.constant 2.500000e-02 : f32
    %64 = vector.broadcast %cst_19 : f32 to vector<152x1xf32>
    %65 = arith.mulf %63, %64 : vector<152x1xf32>
    %cst_20 = arith.constant 9.99999974E-6 : f32
    %66 = vector.broadcast %cst_20 : f32 to vector<152x1xf32>
    %67 = arith.addf %65, %66 : vector<152x1xf32>
    %68 = math.rsqrt %67 : vector<152x1xf32>
    %69 = vector.broadcast %68 : vector<152x1xf32> to vector<152x128xf32>
    %70 = arith.mulf %60, %69 : vector<152x128xf32>
    %71 = vector.broadcast %47 : vector<1x128xf32> to vector<152x128xf32>
    %72 = arith.mulf %70, %71 : vector<152x128xf32>
    %73 = vector.broadcast %48 : vector<1x128xf32> to vector<152x128xf32>
    %74 = arith.addf %72, %73 : vector<152x128xf32>
    %cst_21 = arith.constant 5.000000e-01 : f32
    %75 = vector.broadcast %cst_21 : f32 to vector<152x128xf32>
    %76 = arith.mulf %75, %74 : vector<152x128xf32>
    %cst_22 = arith.constant 0.707106769 : f32
    %77 = vector.broadcast %cst_22 : f32 to vector<152x128xf32>
    %78 = arith.mulf %74, %77 : vector<152x128xf32>
    %79 = math.erf %78 : vector<152x128xf32>
    %cst_23 = arith.constant 1.000000e+00 : f32
    %80 = vector.broadcast %cst_23 : f32 to vector<152x128xf32>
    %81 = arith.addf %80, %79 : vector<152x128xf32>
    %82 = arith.mulf %76, %81 : vector<152x128xf32>
    %c0_24 = arith.constant 0 : index
    %c0_25 = arith.constant 0 : index
    %83 = vector.load %arg5[%c0_24, %c0_25] : memref<152x128xf32, #tpu.memory_space<vmem>>, vector<152x128xf32>
    tpu.vector_store %arg5[%c0_24, %c0_25], %82 {strides = array<i32>} : memref<152x128xf32, #tpu.memory_space<vmem>>, vector<152x128xf32>,
    return
  }
  func.func @transform_0(%arg0: i32) -> (i32, i32) {
    %c0_i32 = arith.constant 0 : i32
    %c0_i32_0 = arith.constant 0 : i32
    return %arg0, %c0_i32 : i32, i32
  }
  func.func @transform_1(%arg0: i32) -> (i32, i32) {
    %c0_i32 = arith.constant 0 : i32
    %c0_i32_0 = arith.constant 0 : i32
    %c0_i32_1 = arith.constant 0 : i32
    return %c0_i32, %c0_i32_0 : i32, i32
  }
  func.func @transform_2(%arg0: i32) -> (i32, i32) {
    %c0_i32 = arith.constant 0 : i32
    %c0_i32_0 = arith.constant 0 : i32
    %c0_i32_1 = arith.constant 0 : i32
    return %c0_i32, %c0_i32_0 : i32, i32
  }
  func.func @transform_3(%arg0: i32) -> (i32, i32) {
    %c0_i32 = arith.constant 0 : i32
    %c0_i32_0 = arith.constant 0 : i32
    %c0_i32_1 = arith.constant 0 : i32
    return %c0_i32, %c0_i32_0 : i32, i32
  }
  func.func @transform_4(%arg0: i32) -> (i32, i32) {
    %c0_i32 = arith.constant 0 : i32
    %c0_i32_0 = arith.constant 0 : i32
    return %arg0, %c0_i32 : i32, i32
  }
}

</mosaic_0001>

<llo_original>
// kernel: batch_encoder_mlp_forward.1
$region0: #{batch_encoder_mlp_forward.1}
  #allocation0 [shape = 'u32[]', space=smem, size = 0x4, offset = 0x4, fixed_abs, tag = 'smem constant byte address 0x4 - core index']
  #allocation1 [shape = 'u32[144,128]{1,0:T(1,128)}', space=vmem, size = 0x12000, scoped, tag = 'internal scratch']
  %s0 = inlined_call_operand.vmem [shape: f32[304,128], index: 0, kind: input, shape index: {}]
  %s1 = inlined_call_operand.vmem [shape: bf16[128,128], index: 1, kind: input, shape index: {}]
  %s2 = inlined_call_operand.vmem [shape: bf16[128,128], index: 2, kind: input, shape index: {}]
  %s3 = inlined_call_operand.vmem [shape: f32[8,128], index: 3, kind: input, shape index: {}]
  %s4 = inlined_call_operand.vmem [shape: f32[304,128], index: 4, kind: output, shape index: {}]
  %s5 = sld [smem:[#allocation0]]
  $region49: #{batch_encoder_mlp_forward.1} parent=0
    _
  %s7 = ssub.s32 1, %s5
  %s8 = scalar_select 0, %s7, %s5
  loop: start=0, step=1, limit=4
  $region2: #{batch_encoder_mlp_forward.1} parent=0 // loop_pre_header
    _
  $region3: #{batch_encoder_mlp_forward.1} parent=0 // loop_header
    %s10 = sphi 0, %s14
    %p11 = scmp.ge.s32.totalorder %s10, 4
    %s20 = sphi 0, %s22
    %s23 = sphi 0, %s20
    %s24 = sphi 0, %s23
    %s40 = sphi 0, %s24
    %s44 = sphi 0, %s44
    %s46 = sphi 0, %s44
    %s47 = sphi 0, %s46
    %s61 = sphi 0, %s47
    %s65 = sphi 0, %s65
    %s67 = sphi 0, %s65
    %s68 = sphi 0, %s67
    %s82 = sphi 0, %s68
    %s86 = sphi 0, %s86
    %s88 = sphi 0, %s86
    %s89 = sphi 0, %s88
    %s103 = sphi 0, %s89
    %s109 = sphi 0, %s111
    %s112 = sphi 0, %s109
    %s113 = sphi 0, %s112
    %s129 = sphi 0, %s113
  $region4: #{batch_encoder_mlp_forward.1} parent=0 // loop_header_branch
    %13 = sbr.rel (%p11) target = $region8
  $region5: #{batch_encoder_mlp_forward.1} parent=0 // loop_body
    %s15 = ssub.s32 %s10, 1
    %s16 = ssub.s32 %s10, 2
    %s17 = sadd.s32 %s10, 1
    %s18 = ssub.s32 %s10, %s17
    %p19 = scmp.eq.s32.totalorder %s18, 0
    %s21 = sadd.s32 %s20, 1
    %s22 = scalar_select %p19, %s20, %s21
    %p25 = pneg %p19
    %p26 = scmp.eq.s32.totalorder %s10, 1
    %p27 = por %p25, %p26
    %p28 = scmp.ne.s32.totalorder %s20, %s23
    %p29 = scmp.eq.s32.totalorder %s10, 0
    %p30 = por %p28, %p29
    %p31 = scmp.ne.s32.totalorder %s20, %s23
    %p32 = scmp.eq.s32.totalorder %s15, 1
    %p33 = por %p31, %p32
    %p34 = scmp.ne.s32.totalorder %s23, %s24
    %p35 = scmp.eq.s32.totalorder %s15, 0
    %p36 = por %p34, %p35
    %p37 = scmp.ne.s32.totalorder %s23, %s24
    %p38 = scmp.eq.s32.totalorder %s16, 1
    %p39 = por %p37, %p38
    %p41 = scmp.ne.s32.totalorder %s24, %s40
    %p42 = scmp.eq.s32.totalorder %s16, 0
    %p43 = por %p41, %p42
    %s45 = sadd.s32 %s44, 1
    %p48 = scmp.eq.s32.totalorder %s10, 1
    %p49 = scmp.ne.s32.totalorder %s44, %s46
    %p50 = scmp.eq.s32.totalorder %s10, 0
    %p51 = por %p49, %p50
    %p52 = scmp.ne.s32.totalorder %s44, %s46
    %p53 = scmp.eq.s32.totalorder %s15, 1
    %p54 = por %p52, %p53
    %p55 = scmp.ne.s32.totalorder %s46, %s47
    %p56 = scmp.eq.s32.totalorder %s15, 0
    %p57 = por %p55, %p56
    %p58 = scmp.ne.s32.totalorder %s46, %s47
    %p59 = scmp.eq.s32.totalorder %s16, 1
    %p60 = por %p58, %p59
    %p62 = scmp.ne.s32.totalorder %s47, %s61
    %p63 = scmp.eq.s32.totalorder %s16, 0
    %p64 = por %p62, %p63
    %s66 = sadd.s32 %s65, 1
    %p69 = scmp.eq.s32.totalorder %s10, 1
    %p70 = scmp.ne.s32.totalorder %s65, %s67
    %p71 = scmp.eq.s32.totalorder %s10, 0
    %p72 = por %p70, %p71
    %p73 = scmp.ne.s32.totalorder %s65, %s67
    %p74 = scmp.eq.s32.totalorder %s15, 1
    %p75 = por %p73, %p74
    %p76 = scmp.ne.s32.totalorder %s67, %s68
    %p77 = scmp.eq.s32.totalorder %s15, 0
    %p78 = por %p76, %p77
    %p79 = scmp.ne.s32.totalorder %s67, %s68
    %p80 = scmp.eq.s32.totalorder %s16, 1
    %p81 = por %p79, %p80
    %p83 = scmp.ne.s32.totalorder %s68, %s82
    %p84 = scmp.eq.s32.totalorder %s16, 0
    %p85 = por %p83, %p84
    %s87 = sadd.s32 %s86, 1
    %p90 = scmp.eq.s32.totalorder %s10, 1
    %p91 = scmp.ne.s32.totalorder %s86, %s88
    %p92 = scmp.eq.s32.totalorder %s10, 0
    %p93 = por %p91, %p92
    %p94 = scmp.ne.s32.totalorder %s86, %s88
    %p95 = scmp.eq.s32.totalorder %s15, 1
    %p96 = por %p94, %p95
    %p97 = scmp.ne.s32.totalorder %s88, %s89
    %p98 = scmp.eq.s32.totalorder %s15, 0
    %p99 = por %p97, %p98
    %p100 = scmp.ne.s32.totalorder %s88, %s89
    %p101 = scmp.eq.s32.totalorder %s16, 1
    %p102 = por %p100, %p101
    %p104 = scmp.ne.s32.totalorder %s89, %s103
    %p105 = scmp.eq.s32.totalorder %s16, 0
    %p106 = por %p104, %p105
    %s107 = ssub.s32 %s10, %s17
    %p108 = scmp.eq.s32.totalorder %s107, 0
    %s110 = sadd.s32 %s109, 1
    %s111 = scalar_select %p108, %s109, %s110
    %p114 = pneg %p108
    %p115 = scmp.eq.s32.totalorder %s10, 1
    %p116 = por %p114, %p115
    %p117 = scmp.ne.s32.totalorder %s109, %s112
    %p118 = scmp.eq.s32.totalorder %s10, 0
    %p119 = por %p117, %p118
    %p120 = scmp.ne.s32.totalorder %s109, %s112
    %p121 = scmp.eq.s32.totalorder %s15, 1
    %p122 = por %p120, %p121
    %p123 = scmp.ne.s32.totalorder %s112, %s113
    %p124 = scmp.eq.s32.totalorder %s15, 0
    %p125 = por %p123, %p124
    %p126 = scmp.ne.s32.totalorder %s112, %s113
    %p127 = scmp.eq.s32.totalorder %s16, 1
    %p128 = por %p126, %p127
    %p130 = scmp.ne.s32.totalorder %s113, %s129
    %p131 = scmp.eq.s32.totalorder %s16, 0
    %p132 = por %p130, %p131
    %p133 = scmp.le.s32.totalorder 1, %s10
    %p134 = scmp.lt.s32.totalorder %s10, 3
    %p135 = pnand %p133, %p134
    %p136 = pneg %p135
    // Predicated region
    $region9: #{batch_encoder_mlp_forward.1} parent=5 // pred_check
      _
    $region10: #{batch_encoder_mlp_forward.1} parent=5 // pred_check_branch
      %138 = sbr.rel (%p135) target = $region12
    $region11: #{batch_encoder_mlp_forward.1} parent=5 // pred_region
      %s139 = ssub.s32 %s10, 1
      // Predicated region
      $region13: #{batch_encoder_mlp_forward.1} parent=11 // pred_check
        %p140 = pneg %p57
      $region14: #{batch_encoder_mlp_forward.1} parent=11 // pred_check_branch
        %142 = sbr.rel (%p140) target = $region16
      $region15: #{batch_encoder_mlp_forward.1} parent=11 // pred_region
        _
      $region16: #{batch_encoder_mlp_forward.1} parent=11 // pred_fallthru
        _
      // Predicated region
      $region17: #{batch_encoder_mlp_forward.1} parent=11 // pred_check
        %p143 = pneg %p78
      $region18: #{batch_encoder_mlp_forward.1} parent=11 // pred_check_branch
        %145 = sbr.rel (%p143) target = $region20
      $region19: #{batch_encoder_mlp_forward.1} parent=11 // pred_region
        _
      $region20: #{batch_encoder_mlp_forward.1} parent=11 // pred_fallthru
        _
      // Predicated region
      $region21: #{batch_encoder_mlp_forward.1} parent=11 // pred_check
        %p146 = pneg %p99
      $region22: #{batch_encoder_mlp_forward.1} parent=11 // pred_check_branch
        %148 = sbr.rel (%p146) target = $region24
      $region23: #{batch_encoder_mlp_forward.1} parent=11 // pred_region
        _
      $region24: #{batch_encoder_mlp_forward.1} parent=11 // pred_fallthru
        _
    $region12: #{batch_encoder_mlp_forward.1} parent=5 // pred_fallthru
      _
    %p149 = scmp.lt.s32.totalorder %s10, 2
    // Predicated region
    $region25: #{batch_encoder_mlp_forward.1} parent=5 // pred_check
      %p150 = pneg %p149
    $region26: #{batch_encoder_mlp_forward.1} parent=5 // pred_check_branch
      %152 = sbr.rel (%p150) target = $region28
    $region27: #{batch_encoder_mlp_forward.1} parent=5 // pred_region
      // Predicated region
      $region29: #{batch_encoder_mlp_forward.1} parent=27 // pred_check
        %p153 = pneg %p30
      $region30: #{batch_encoder_mlp_forward.1} parent=27 // pred_check_branch
        %155 = sbr.rel (%p153) target = $region32
      $region31: #{batch_encoder_mlp_forward.1} parent=27 // pred_region
        %s156 = smul.u32 19, %s10
        %p157 = scmp.lt.s32.totalorder %s156, 37
        %s158 = scalar_select %p157, %s156, 37
        %s159 = smul.addr %s158, 8
        %s160 = scalar_lea.vmem %s0, %s159
        %s161 = smul.u32 19, %s10
      $region32: #{batch_encoder_mlp_forward.1} parent=27 // pred_fallthru
        _
    $region28: #{batch_encoder_mlp_forward.1} parent=5 // pred_fallthru
      _
    %p162 = scmp.le.s32.totalorder 1, %s10
    %p163 = scmp.lt.s32.totalorder %s10, 3
    %p164 = pnand %p162, %p163
    %p165 = pneg %p164
    // Predicated region
    $region33: #{batch_encoder_mlp_forward.1} parent=5 // pred_check
      _
    $region34: #{batch_encoder_mlp_forward.1} parent=5 // pred_check_branch
      %167 = sbr.rel (%p164) target = $region36
    $region35: #{batch_encoder_mlp_forward.1} parent=5 // pred_region
      %s168 = ssub.s32 %s10, 1
      %s169 = smul.u32 19, %s15
      %p170 = scmp.lt.s32.totalorder %s169, 37
      %s171 = scalar_select %p170, %s169, 37
      %s172 = smul.addr %s171, 8
      %s173 = scalar_lea.vmem %s0, %s172
      %p174 = pneg %p36
      %p175 = pneg %p33
      %p176 = pneg %p57
      %p177 = pneg %p54
      %p178 = pneg %p78
      %p179 = pneg %p75
      %p180 = pneg %p99
      %p181 = pneg %p96
      %p182 = pneg %p125
      %p183 = pneg %p122
      %s184 = smul.u32 19, %s15
      %p185 = scmp.lt.s32.totalorder %s184, 37
      %s186 = scalar_select %p185, %s184, 37
      %s187 = smul.addr %s186, 8
      %s188 = scalar_lea.vmem %s4, %s187
      %s189 = smul.u32 19, %s15
      %p190 = scmp.lt.s32.totalorder %s189, 37
      %s191 = scalar_select %p190, %s189, 37
      %s192 = smul.addr %s191, 8
      %s193 = scalar_lea.vmem %s0, %s192
      %s194 = smul.u32 19, %s15
      %s195 = smul.u32 19, %s15
      %p196 = scmp.lt.s32.totalorder %s195, 37
      %s197 = scalar_select %p196, %s195, 37
      %s198 = smul.addr %s197, 8
      %s199 = scalar_lea.vmem %s4, %s198
      %s200 = smul.u32 19, %s15
      %v202 = vlaneseq
      %v203 = vand.u32 %v202, 127
      %vm204 = vcmp.lt.s32.totalorder %v203, 40
      %v205 = vsel %vm204, 1, 0
      %v206 = vcvt.s32.f32 %v205
      %v207 = vld [vmem:[%s3] sm:$0xff]
      %v208 = vld [vmem:[%s193] sm:$0xff]
      %v209 = vld [vmem:[%s193 + $0x8] sm:$0xff]
      %v210 = vld [vmem:[%s193 + $0x10] sm:$0xff]
      %v211 = vld [vmem:[%s193 + $0x18] sm:$0xff]
      %v212 = vld [vmem:[%s193 + $0x20] sm:$0xff]
      %v213 = vld [vmem:[%s193 + $0x28] sm:$0xff]
      %v214 = vld [vmem:[%s193 + $0x30] sm:$0xff]
      %v215 = vld [vmem:[%s193 + $0x38] sm:$0xff]
      %v216 = vld [vmem:[%s193 + $0x40] sm:$0xff]
      %v217 = vld [vmem:[%s193 + $0x48] sm:$0xff]
      %v218 = vld [vmem:[%s193 + $0x50] sm:$0xff]
      %v219 = vld [vmem:[%s193 + $0x58] sm:$0xff]
      %v220 = vld [vmem:[%s193 + $0x60] sm:$0xff]
      %v221 = vld [vmem:[%s193 + $0x68] sm:$0xff]
      %v222 = vld [vmem:[%s193 + $0x70] sm:$0xff]
      %v223 = vld [vmem:[%s193 + $0x78] sm:$0xff]
      %v224 = vld [vmem:[%s193 + $0x80] sm:$0xff]
      %v225 = vld [vmem:[%s193 + $0x88] sm:$0xff]
      %v226 = vld [vmem:[%s193 + $0x90] sm:$0xff]
      %v227 = vpack.c.bf16 %v209, %v208
      %v228 = vpack.c.bf16 %v211, %v210
      %v229 = vpack.c.bf16 %v213, %v212
      %v230 = vpack.c.bf16 %v215, %v214
      %v231 = vpack.c.bf16 %v217, %v216
      %v232 = vpack.c.bf16 %v219, %v218
      %v233 = vpack.c.bf16 %v221, %v220
      %v234 = vpack.c.bf16 %v223, %v222
      %v235 = vpack.c.bf16 %v225, %v224
      %v236 = vpack.c.bf16 %v226, %v226
      %v237 = vld [vmem:[%s1] sm:$0xf]
      %v238 = vld [vmem:[%s1 + $0x4] sm:$0xf]
      %v239 = vld [vmem:[%s1 + $0x8] sm:$0xf]
      %v240 = vld [vmem:[%s1 + $0xc] sm:$0xf]
      %v241 = vld [vmem:[%s1 + $0x10] sm:$0xf]
      %v242 = vld [vmem:[%s1 + $0x14] sm:$0xf]
      %v243 = vld [vmem:[%s1 + $0x18] sm:$0xf]
      %v244 = vld [vmem:[%s1 + $0x1c] sm:$0xf]
      %v245 = vld [vmem:[%s1 + $0x20] sm:$0xf]
      %v246 = vld [vmem:[%s1 + $0x24] sm:$0xf]
      %v247 = vld [vmem:[%s1 + $0x28] sm:$0xf]
      %v248 = vld [vmem:[%s1 + $0x2c] sm:$0xf]
      %v249 = vld [vmem:[%s1 + $0x30] sm:$0xf]
      %v250 = vld [vmem:[%s1 + $0x34] sm:$0xf]
      %v251 = vld [vmem:[%s1 + $0x38] sm:$0xf]
      %v252 = vld [vmem:[%s1 + $0x3c] sm:$0xf]
      %v253 = vlaneseq
      %v254 = vshrl.u32 %v253, 7
      %v255 = vsub.s32 0, %v254
      %v256 = vrot.slane %v207, %v255
      %v273 = vunpack.c.l.b16 %v237
      %v274 = vunpack.c.l.b16 %v238
      %v275 = vunpack.c.l.b16 %v239
      %v276 = vunpack.c.l.b16 %v240
      %v277 = vunpack.c.l.b16 %v241
      %v278 = vunpack.c.l.b16 %v242
      %v279 = vunpack.c.l.b16 %v243
      %v280 = vunpack.c.l.b16 %v244
      %v281 = vunpack.c.l.b16 %v245
      %v282 = vunpack.c.l.b16 %v246
      %v283 = vunpack.c.l.b16 %v247
      %v284 = vunpack.c.l.b16 %v248
      %v285 = vunpack.c.l.b16 %v249
      %v286 = vunpack.c.l.b16 %v250
      %v287 = vunpack.c.l.b16 %v251
      %v288 = vunpack.c.l.b16 %v252
      %v289 = vpack.c.b16 %v274, %v273
      %v290 = vpack.c.b16 %v276, %v275
      %v291 = vpack.c.b16 %v278, %v277
      %v292 = vpack.c.b16 %v280, %v279
      %v293 = vpack.c.b16 %v282, %v281
      %v294 = vpack.c.b16 %v284, %v283
      %v295 = vpack.c.b16 %v286, %v285
      %v296 = vpack.c.b16 %v288, %v287
      %305 = vmatprep.subr.bf16.mxu0 0
      %306 = vmatpush1.bf16.msra.mxu0 %v296
      %307 = vmatprep.subr.bf16.mxu0 0
      %308 = vmatpush1.bf16.msra.mxu0 %v295
      %309 = vmatprep.subr.bf16.mxu0 0
      %310 = vmatpush1.bf16.msra.mxu0 %v294
      %311 = vmatprep.subr.bf16.mxu0 0
      %312 = vmatpush1.bf16.msra.mxu0 %v293
      %313 = vmatprep.subr.bf16.mxu0 0
      %314 = vmatpush1.bf16.msra.mxu0 %v292
      %315 = vmatprep.subr.bf16.mxu0 0
      %316 = vmatpush1.bf16.msra.mxu0 %v291
      %317 = vmatprep.subr.bf16.mxu0 0
      %318 = vmatpush1.bf16.msra.mxu0 %v290
      %319 = vmatprep.subr.bf16.mxu0 0
      %320 = vmatpush1.bf16.msra.mxu0 %v289
      %321 = vmatprep.subr.bf16.mxu0 0
      %322 = vmatpush2.bf16.msra.mxu0 0
      %323 = vmatprep.subr.bf16.mxu0 0
      %324 = vmatpush2.bf16.msra.mxu0 0
      %325 = vmatprep.subr.bf16.mxu0 0
      %326 = vmatpush2.bf16.msra.mxu0 0
      %327 = vmatprep.subr.bf16.mxu0 0
      %328 = vmatpush2.bf16.msra.mxu0 0
      %329 = vmatprep.subr.bf16.mxu0 0
      %330 = vmatpush2.bf16.msra.mxu0 0
      %331 = vmatprep.subr.bf16.mxu0 0
      %332 = vmatpush2.bf16.msra.mxu0 0
      %333 = vmatprep.subr.bf16.mxu0 0
      %334 = vmatpush2.bf16.msra.mxu0 0
      %335 = vmatprep.subr.bf16.mxu0 0
      %336 = vmatpush2.bf16.msra.mxu0 0
      %337 = vmatprep.mubr.bf16.mxu0 0
      %338 = vmatmul.mubr.bf16.gmra.mxu0 %v227
      %v339 = vpop.f32.mrf.mxu0
      %v340 = vadd.f32 %v256, %v339
      %v341 = vpop.f32.mrf.mxu0
      %v342 = vpop.f32.mrf.mxu0
      %v343 = vadd.f32 %v256, %v342
      %v344 = vpop.f32.mrf.mxu0
      %345 = vmatprep.mubr.bf16.mxu0 0
      %346 = vmatmul.mubr.bf16.gmra.mxu0 %v228
      %v347 = vpop.f32.mrf.mxu0
      %v348 = vadd.f32 %v256, %v347
      %v349 = vpop.f32.mrf.mxu0
      %v350 = vpop.f32.mrf.mxu0
      %v351 = vadd.f32 %v256, %v350
      %v352 = vpop.f32.mrf.mxu0
      %353 = vmatprep.mubr.bf16.mxu0 0
      %354 = vmatmul.mubr.bf16.gmra.mxu0 %v229
      %v355 = vpop.f32.mrf.mxu0
      %v356 = vadd.f32 %v256, %v355
      %v357 = vpop.f32.mrf.mxu0
      %v358 = vpop.f32.mrf.mxu0
      %v359 = vadd.f32 %v256, %v358
      %v360 = vpop.f32.mrf.mxu0
      %361 = vmatprep.mubr.bf16.mxu0 0
      %362 = vmatmul.mubr.bf16.gmra.mxu0 %v230
      %v363 = vpop.f32.mrf.mxu0
      %v364 = vadd.f32 %v256, %v363
      %v365 = vpop.f32.mrf.mxu0
      %v366 = vpop.f32.mrf.mxu0
      %v367 = vadd.f32 %v256, %v366
      %v368 = vpop.f32.mrf.mxu0
      %369 = vmatprep.mubr.bf16.mxu0 0
      %370 = vmatmul.mubr.bf16.gmra.mxu0 %v231
      %v371 = vpop.f32.mrf.mxu0
      %v372 = vadd.f32 %v256, %v371
      %v373 = vpop.f32.mrf.mxu0
      %v374 = vpop.f32.mrf.mxu0
      %v375 = vadd.f32 %v256, %v374
      %v376 = vpop.f32.mrf.mxu0
      %377 = vmatprep.mubr.bf16.mxu0 0
      %378 = vmatmul.mubr.bf16.gmra.mxu0 %v232
      %v379 = vpop.f32.mrf.mxu0
      %v380 = vadd.f32 %v256, %v379
      %v381 = vpop.f32.mrf.mxu0
      %v382 = vpop.f32.mrf.mxu0
      %v383 = vadd.f32 %v256, %v382
      %v384 = vpop.f32.mrf.mxu0
      %385 = vmatprep.mubr.bf16.mxu0 0
      %386 = vmatmul.mubr.bf16.gmra.mxu0 %v233
      %v387 = vpop.f32.mrf.mxu0
      %v388 = vadd.f32 %v256, %v387
      %v389 = vpop.f32.mrf.mxu0
      %v390 = vpop.f32.mrf.mxu0
      %v391 = vadd.f32 %v256, %v390
      %v392 = vpop.f32.mrf.mxu0
      %393 = vmatprep.mubr.bf16.mxu0 0
      %394 = vmatmul.mubr.bf16.gmra.mxu0 %v234
      %v395 = vpop.f32.mrf.mxu0
      %v396 = vadd.f32 %v256, %v395
      %v397 = vpop.f32.mrf.mxu0
      %v398 = vpop.f32.mrf.mxu0
      %v399 = vadd.f32 %v256, %v398
      %v400 = vpop.f32.mrf.mxu0
      %401 = vmatprep.mubr.bf16.mxu0 0
      %402 = vmatmul.mubr.bf16.gmra.mxu0 %v235
      %v403 = vpop.f32.mrf.mxu0
      %v404 = vadd.f32 %v256, %v403
      %v405 = vpop.f32.mrf.mxu0
      %v406 = vpop.f32.mrf.mxu0
      %v407 = vadd.f32 %v256, %v406
      %v408 = vpop.f32.mrf.mxu0
      %409 = vmatprep.mubr.bf16.mxu0 0
      %410 = vmatmul.mubr.bf16.gmra.mxu0 %v236
      %v411 = vpop.f32.mrf.mxu0
      %v412 = vadd.f32 %v256, %v411
      %v413 = vpop.f32.mrf.mxu0
      %v414 = vpop.f32.mrf.mxu0
      %v415 = vpop.f32.mrf.mxu0
      %416 = vdwg.mxu0
      %417 = vadd.xlane.f32.xlu0 %v340
      %v418 = vpop.xlane.xlu0 %417
      %419 = vadd.xlane.f32.xlu0 %v343
      %v420 = vpop.xlane.xlu0 %419
      %421 = vadd.xlane.f32.xlu0 %v348
      %v422 = vpop.xlane.xlu0 %421
      %423 = vadd.xlane.f32.xlu0 %v351
      %v424 = vpop.xlane.xlu0 %423
      %425 = vadd.xlane.f32.xlu0 %v356
      %v426 = vpop.xlane.xlu0 %425
      %427 = vadd.xlane.f32.xlu0 %v359
      %v428 = vpop.xlane.xlu0 %427
      %429 = vadd.xlane.f32.xlu0 %v364
      %v430 = vpop.xlane.xlu0 %429
      %431 = vadd.xlane.f32.xlu0 %v367
      %v432 = vpop.xlane.xlu0 %431
      %433 = vadd.xlane.f32.xlu0 %v372
      %v434 = vpop.xlane.xlu0 %433
      %435 = vadd.xlane.f32.xlu0 %v375
      %v436 = vpop.xlane.xlu0 %435
      %437 = vadd.xlane.f32.xlu0 %v380
      %v438 = vpop.xlane.xlu0 %437
      %439 = vadd.xlane.f32.xlu0 %v383
      %v440 = vpop.xlane.xlu0 %439
      %441 = vadd.xlane.f32.xlu0 %v388
      %v442 = vpop.xlane.xlu0 %441
      %443 = vadd.xlane.f32.xlu0 %v391
      %v444 = vpop.xlane.xlu0 %443
      %445 = vadd.xlane.f32.xlu0 %v396
      %v446 = vpop.xlane.xlu0 %445
      %447 = vadd.xlane.f32.xlu0 %v399
      %v448 = vpop.xlane.xlu0 %447
      %449 = vadd.xlane.f32.xlu0 %v404
      %v450 = vpop.xlane.xlu0 %449
      %451 = vadd.xlane.f32.xlu0 %v407
      %v452 = vpop.xlane.xlu0 %451
      %453 = vadd.xlane.f32.xlu0 %v412
      %v454 = vpop.xlane.xlu0 %453
      %v455 = vmul.f32 %v418, 0.025
      %v456 = vmul.f32 %v420, 0.025
      %v457 = vmul.f32 %v422, 0.025
      %v458 = vmul.f32 %v424, 0.025
      %v459 = vmul.f32 %v426, 0.025
      %v460 = vmul.f32 %v428, 0.025
      %v461 = vmul.f32 %v430, 0.025
      %v462 = vmul.f32 %v432, 0.025
      %v463 = vmul.f32 %v434, 0.025
      %v464 = vmul.f32 %v436, 0.025
      %v465 = vmul.f32 %v438, 0.025
      %v466 = vmul.f32 %v440, 0.025
      %v467 = vmul.f32 %v442, 0.025
      %v468 = vmul.f32 %v444, 0.025
      %v469 = vmul.f32 %v446, 0.025
      %v470 = vmul.f32 %v448, 0.025
      %v471 = vmul.f32 %v450, 0.025
      %v472 = vmul.f32 %v452, 0.025
      %v473 = vmul.f32 %v454, 0.025
      %v474 = vsub.f32 %v340, %v455
      %v475 = vsub.f32 %v343, %v456
      %v476 = vsub.f32 %v348, %v457
      %v477 = vsub.f32 %v351, %v458
      %v478 = vsub.f32 %v356, %v459
      %v479 = vsub.f32 %v359, %v460
      %v480 = vsub.f32 %v364, %v461
      %v481 = vsub.f32 %v367, %v462
      %v482 = vsub.f32 %v372, %v463
      %v483 = vsub.f32 %v375, %v464
      %v484 = vsub.f32 %v380, %v465
      %v485 = vsub.f32 %v383, %v466
      %v486 = vsub.f32 %v388, %v467
      %v487 = vsub.f32 %v391, %v468
      %v488 = vsub.f32 %v396, %v469
      %v489 = vsub.f32 %v399, %v470
      %v490 = vsub.f32 %v404, %v471
      %v491 = vsub.f32 %v407, %v472
      %v492 = vsub.f32 %v412, %v473
      %v493 = vmul.f32 %v474, %v206
      %v494 = vmul.f32 %v475, %v206
      %v495 = vmul.f32 %v476, %v206
      %v496 = vmul.f32 %v477, %v206
      %v497 = vmul.f32 %v478, %v206
      %v498 = vmul.f32 %v479, %v206
      %v499 = vmul.f32 %v480, %v206
      %v500 = vmul.f32 %v481, %v206
      %v501 = vmul.f32 %v482, %v206
      %v502 = vmul.f32 %v483, %v206
      %v503 = vmul.f32 %v484, %v206
      %v504 = vmul.f32 %v485, %v206
      %v505 = vmul.f32 %v486, %v206
      %v506 = vmul.f32 %v487, %v206
      %v507 = vmul.f32 %v488, %v206
      %v508 = vmul.f32 %v489, %v206
      %v509 = vmul.f32 %v490, %v206
      %v510 = vmul.f32 %v491, %v206
      %v511 = vmul.f32 %v492, %v206
      %v512 = vmul.f32 %v493, %v493
      %v513 = vmul.f32 %v494, %v494
      %v514 = vmul.f32 %v495, %v495
      %v515 = vmul.f32 %v496, %v496
      %v516 = vmul.f32 %v497, %v497
      %v517 = vmul.f32 %v498, %v498
      %v518 = vmul.f32 %v499, %v499
      %v519 = vmul.f32 %v500, %v500
      %v520 = vmul.f32 %v501, %v501
      %v521 = vmul.f32 %v502, %v502
      %v522 = vmul.f32 %v503, %v503
      %v523 = vmul.f32 %v504, %v504
      %v524 = vmul.f32 %v505, %v505
      %v525 = vmul.f32 %v506, %v506
      %v526 = vmul.f32 %v507, %v507
      %v527 = vmul.f32 %v508, %v508
      %v528 = vmul.f32 %v509, %v509
      %v529 = vmul.f32 %v510, %v510
      %v530 = vmul.f32 %v511, %v511
      %531 = vadd.xlane.f32.xlu0 %v512
      %v532 = vpop.xlane.xlu0 %531
      %533 = vadd.xlane.f32.xlu0 %v513
      %v534 = vpop.xlane.xlu0 %533
      %535 = vadd.xlane.f32.xlu0 %v514
      %v536 = vpop.xlane.xlu0 %535
      %537 = vadd.xlane.f32.xlu0 %v515
      %v538 = vpop.xlane.xlu0 %537
      %539 = vadd.xlane.f32.xlu0 %v516
      %v540 = vpop.xlane.xlu0 %539
      %541 = vadd.xlane.f32.xlu0 %v517
      %v542 = vpop.xlane.xlu0 %541
      %543 = vadd.xlane.f32.xlu0 %v518
      %v544 = vpop.xlane.xlu0 %543
      %545 = vadd.xlane.f32.xlu0 %v519
      %v546 = vpop.xlane.xlu0 %545
      %547 = vadd.xlane.f32.xlu0 %v520
      %v548 = vpop.xlane.xlu0 %547
      %549 = vadd.xlane.f32.xlu0 %v521
      %v550 = vpop.xlane.xlu0 %549
      %551 = vadd.xlane.f32.xlu0 %v522
      %v552 = vpop.xlane.xlu0 %551
      %553 = vadd.xlane.f32.xlu0 %v523
      %v554 = vpop.xlane.xlu0 %553
      %555 = vadd.xlane.f32.xlu0 %v524
      %v556 = vpop.xlane.xlu0 %555
      %557 = vadd.xlane.f32.xlu0 %v525
      %v558 = vpop.xlane.xlu0 %557
      %559 = vadd.xlane.f32.xlu0 %v526
      %v560 = vpop.xlane.xlu0 %559
      %561 = vadd.xlane.f32.xlu0 %v527
      %v562 = vpop.xlane.xlu0 %561
      %563 = vadd.xlane.f32.xlu0 %v528
      %v564 = vpop.xlane.xlu0 %563
      %565 = vadd.xlane.f32.xlu0 %v529
      %v566 = vpop.xlane.xlu0 %565
      %567 = vadd.xlane.f32.xlu0 %v530
      %v568 = vpop.xlane.xlu0 %567
      %v569 = vmul.f32 %v532, 0.025
      %v570 = vmul.f32 %v534, 0.025
      %v571 = vmul.f32 %v536, 0.025
      %v572 = vmul.f32 %v538, 0.025
      %v573 = vmul.f32 %v540, 0.025
      %v574 = vmul.f32 %v542, 0.025
      %v575 = vmul.f32 %v544, 0.025
      %v576 = vmul.f32 %v546, 0.025
      %v577 = vmul.f32 %v548, 0.025
      %v578 = vmul.f32 %v550, 0.025
      %v579 = vmul.f32 %v552, 0.025
      %v580 = vmul.f32 %v554, 0.025
      %v581 = vmul.f32 %v556, 0.025
      %v582 = vmul.f32 %v558, 0.025
      %v583 = vmul.f32 %v560, 0.025
      %v584 = vmul.f32 %v562, 0.025
      %v585 = vmul.f32 %v564, 0.025
      %v586 = vmul.f32 %v566, 0.025
      %v587 = vmul.f32 %v568, 0.025
      %v588 = vadd.f32 %v569, 1e-05
      %v589 = vadd.f32 %v570, 1e-05
      %v590 = vadd.f32 %v571, 1e-05
      %v591 = vadd.f32 %v572, 1e-05
      %v592 = vadd.f32 %v573, 1e-05
      %v593 = vadd.f32 %v574, 1e-05
      %v594 = vadd.f32 %v575, 1e-05
      %v595 = vadd.f32 %v576, 1e-05
      %v596 = vadd.f32 %v577, 1e-05
      %v597 = vadd.f32 %v578, 1e-05
      %v598 = vadd.f32 %v579, 1e-05
      %v599 = vadd.f32 %v580, 1e-05
      %v600 = vadd.f32 %v581, 1e-05
      %v601 = vadd.f32 %v582, 1e-05
      %v602 = vadd.f32 %v583, 1e-05
      %v603 = vadd.f32 %v584, 1e-05
      %v604 = vadd.f32 %v585, 1e-05
      %v605 = vadd.f32 %v586, 1e-05
      %v606 = vadd.f32 %v587, 1e-05
      %v607 = vrsqrt.pop %v588
      %v608 = vrsqrt.pop %v589
      %v609 = vrsqrt.pop %v590
      %v610 = vrsqrt.pop %v591
      %v611 = vrsqrt.pop %v592
      %v612 = vrsqrt.pop %v593
      %v613 = vrsqrt.pop %v594
      %v614 = vrsqrt.pop %v595
      %v615 = vrsqrt.pop %v596
      %v616 = vrsqrt.pop %v597
      %v617 = vrsqrt.pop %v598
      %v618 = vrsqrt.pop %v599
      %v619 = vrsqrt.pop %v600
      %v620 = vrsqrt.pop %v601
      %v621 = vrsqrt.pop %v602
      %v622 = vrsqrt.pop %v603
      %v623 = vrsqrt.pop %v604
      %v624 = vrsqrt.pop %v605
      %v625 = vrsqrt.pop %v606
      %v626 = vmul.f32 %v493, %v607
      %v627 = vmul.f32 %v494, %v608
      %v628 = vmul.f32 %v495, %v609
      %v629 = vmul.f32 %v496, %v610
      %v630 = vmul.f32 %v497, %v611
      %v631 = vmul.f32 %v498, %v612
      %v632 = vmul.f32 %v499, %v613
      %v633 = vmul.f32 %v500, %v614
      %v634 = vmul.f32 %v501, %v615
      %v635 = vmul.f32 %v502, %v616
      %v636 = vmul.f32 %v503, %v617
      %v637 = vmul.f32 %v504, %v618
      %v638 = vmul.f32 %v505, %v619
      %v639 = vmul.f32 %v506, %v620
      %v640 = vmul.f32 %v507, %v621
      %v641 = vmul.f32 %v508, %v622
      %v642 = vmul.f32 %v509, %v623
      %v643 = vmul.f32 %v510, %v624
      %v644 = vmul.f32 %v511, %v625
      %v645 = vlaneseq
      %v646 = vshrl.u32 %v645, 7
      %v647 = vsub.s32 1, %v646
      %v648 = vrot.slane %v207, %v647
      %v649 = vmul.f32 %v626, %v648
      %v650 = vmul.f32 %v627, %v648
      %v651 = vmul.f32 %v628, %v648
      %v652 = vmul.f32 %v629, %v648
      %v653 = vmul.f32 %v630, %v648
      %v654 = vmul.f32 %v631, %v648
      %v655 = vmul.f32 %v632, %v648
      %v656 = vmul.f32 %v633, %v648
      %v657 = vmul.f32 %v634, %v648
      %v658 = vmul.f32 %v635, %v648
      %v659 = vmul.f32 %v636, %v648
      %v660 = vmul.f32 %v637, %v648
      %v661 = vmul.f32 %v638, %v648
      %v662 = vmul.f32 %v639, %v648
      %v663 = vmul.f32 %v640, %v648
      %v664 = vmul.f32 %v641, %v648
      %v665 = vmul.f32 %v642, %v648
      %v666 = vmul.f32 %v643, %v648
      %v667 = vmul.f32 %v644, %v648
      %v668 = vlaneseq
      %v669 = vshrl.u32 %v668, 7
      %v670 = vsub.s32 2, %v669
      %v671 = vrot.slane %v207, %v670
      %v672 = vadd.f32 %v649, %v671
      %v673 = vadd.f32 %v650, %v671
      %v674 = vadd.f32 %v651, %v671
      %v675 = vadd.f32 %v652, %v671
      %v676 = vadd.f32 %v653, %v671
      %v677 = vadd.f32 %v654, %v671
      %v678 = vadd.f32 %v655, %v671
      %v679 = vadd.f32 %v656, %v671
      %v680 = vadd.f32 %v657, %v671
      %v681 = vadd.f32 %v658, %v671
      %v682 = vadd.f32 %v659, %v671
      %v683 = vadd.f32 %v660, %v671
      %v684 = vadd.f32 %v661, %v671
      %v685 = vadd.f32 %v662, %v671
      %v686 = vadd.f32 %v663, %v671
      %v687 = vadd.f32 %v664, %v671
      %v688 = vadd.f32 %v665, %v671
      %v689 = vadd.f32 %v666, %v671
      %v690 = vadd.f32 %v667, %v671
      %v691 = vmul.f32 %v672, 0.5
      %v692 = vmul.f32 %v673, 0.5
      %v693 = vmul.f32 %v674, 0.5
      %v694 = vmul.f32 %v675, 0.5
      %v695 = vmul.f32 %v676, 0.5
      %v696 = vmul.f32 %v677, 0.5
      %v697 = vmul.f32 %v678, 0.5
      %v698 = vmul.f32 %v679, 0.5
      %v699 = vmul.f32 %v680, 0.5
      %v700 = vmul.f32 %v681, 0.5
      %v701 = vmul.f32 %v682, 0.5
      %v702 = vmul.f32 %v683, 0.5
      %v703 = vmul.f32 %v684, 0.5
      %v704 = vmul.f32 %v685, 0.5
      %v705 = vmul.f32 %v686, 0.5
      %v706 = vmul.f32 %v687, 0.5
      %v707 = vmul.f32 %v688, 0.5
      %v708 = vmul.f32 %v689, 0.5
      %v709 = vmul.f32 %v690, 0.5
      %v710 = vmul.f32 %v672, 0.70710677
      %v711 = vmul.f32 %v673, 0.70710677
      %v712 = vmul.f32 %v674, 0.70710677
      %v713 = vmul.f32 %v675, 0.70710677
      %v714 = vmul.f32 %v676, 0.70710677
      %v715 = vmul.f32 %v677, 0.70710677
      %v716 = vmul.f32 %v678, 0.70710677
      %v717 = vmul.f32 %v679, 0.70710677
      %v718 = vmul.f32 %v680, 0.70710677
      %v719 = vmul.f32 %v681, 0.70710677
      %v720 = vmul.f32 %v682, 0.70710677
      %v721 = vmul.f32 %v683, 0.70710677
      %v722 = vmul.f32 %v684, 0.70710677
      %v723 = vmul.f32 %v685, 0.70710677
      %v724 = vmul.f32 %v686, 0.70710677
      %v725 = vmul.f32 %v687, 0.70710677
      %v726 = vmul.f32 %v688, 0.70710677
      %v727 = vmul.f32 %v689, 0.70710677
      %v728 = vmul.f32 %v690, 0.70710677
      %v729 = verf.f32.pop %v710
      %v730 = verf.f32.pop %v711
      %v731 = verf.f32.pop %v712
      %v732 = verf.f32.pop %v713
      %v733 = verf.f32.pop %v714
      %v734 = verf.f32.pop %v715
      %v735 = verf.f32.pop %v716
      %v736 = verf.f32.pop %v717
      %v737 = verf.f32.pop %v718
      %v738 = verf.f32.pop %v719
      %v739 = verf.f32.pop %v720
      %v740 = verf.f32.pop %v721
      %v741 = verf.f32.pop %v722
      %v742 = verf.f32.pop %v723
      %v743 = verf.f32.pop %v724
      %v744 = verf.f32.pop %v725
      %v745 = verf.f32.pop %v726
      %v746 = verf.f32.pop %v727
      %v747 = verf.f32.pop %v728
      %v748 = vadd.f32 %v729, 1.0
      %v749 = vadd.f32 %v730, 1.0
      %v750 = vadd.f32 %v731, 1.0
      %v751 = vadd.f32 %v732, 1.0
      %v752 = vadd.f32 %v733, 1.0
      %v753 = vadd.f32 %v734, 1.0
      %v754 = vadd.f32 %v735, 1.0
      %v755 = vadd.f32 %v736, 1.0
      %v756 = vadd.f32 %v737, 1.0
      %v757 = vadd.f32 %v738, 1.0
      %v758 = vadd.f32 %v739, 1.0
      %v759 = vadd.f32 %v740, 1.0
      %v760 = vadd.f32 %v741, 1.0
      %v761 = vadd.f32 %v742, 1.0
      %v762 = vadd.f32 %v743, 1.0
      %v763 = vadd.f32 %v744, 1.0
      %v764 = vadd.f32 %v745, 1.0
      %v765 = vadd.f32 %v746, 1.0
      %v766 = vadd.f32 %v747, 1.0
      %v767 = vmul.f32 %v691, %v748
      %v768 = vmul.f32 %v692, %v749
      %v769 = vmul.f32 %v693, %v750
      %v770 = vmul.f32 %v694, %v751
      %v771 = vmul.f32 %v695, %v752
      %v772 = vmul.f32 %v696, %v753
      %v773 = vmul.f32 %v697, %v754
      %v774 = vmul.f32 %v698, %v755
      %v775 = vmul.f32 %v699, %v756
      %v776 = vmul.f32 %v700, %v757
      %v777 = vmul.f32 %v701, %v758
      %v778 = vmul.f32 %v702, %v759
      %v779 = vmul.f32 %v703, %v760
      %v780 = vmul.f32 %v704, %v761
      %v781 = vmul.f32 %v705, %v762
      %v782 = vmul.f32 %v706, %v763
      %v783 = vmul.f32 %v707, %v764
      %v784 = vmul.f32 %v708, %v765
      %v785 = vmul.f32 %v709, %v766
      %v786 = vpack.c.bf16 %v768, %v767
      %v787 = vpack.c.bf16 %v770, %v769
      %v788 = vpack.c.bf16 %v772, %v771
      %v789 = vpack.c.bf16 %v774, %v773
      %v790 = vpack.c.bf16 %v776, %v775
      %v791 = vpack.c.bf16 %v778, %v777
      %v792 = vpack.c.bf16 %v780, %v779
      %v793 = vpack.c.bf16 %v782, %v781
      %v794 = vpack.c.bf16 %v784, %v783
      %v795 = vpack.c.bf16 %v785, %v785
      %v796 = vld [vmem:[%s2] sm:$0xf]
      %v797 = vld [vmem:[%s2 + $0x4] sm:$0xf]
      %v798 = vld [vmem:[%s2 + $0x8] sm:$0xf]
      %v799 = vld [vmem:[%s2 + $0xc] sm:$0xf]
      %v800 = vld [vmem:[%s2 + $0x10] sm:$0xf]
      %v801 = vld [vmem:[%s2 + $0x14] sm:$0xf]
      %v802 = vld [vmem:[%s2 + $0x18] sm:$0xf]
      %v803 = vld [vmem:[%s2 + $0x1c] sm:$0xf]
      %v804 = vld [vmem:[%s2 + $0x20] sm:$0xf]
      %v805 = vld [vmem:[%s2 + $0x24] sm:$0xf]
      %v806 = vld [vmem:[%s2 + $0x28] sm:$0xf]
      %v807 = vld [vmem:[%s2 + $0x2c] sm:$0xf]
      %v808 = vld [vmem:[%s2 + $0x30] sm:$0xf]
      %v809 = vld [vmem:[%s2 + $0x34] sm:$0xf]
      %v810 = vld [vmem:[%s2 + $0x38] sm:$0xf]
      %v811 = vld [vmem:[%s2 + $0x3c] sm:$0xf]
      %v812 = vlaneseq
      %v813 = vshrl.u32 %v812, 7
      %v814 = vsub.s32 3, %v813
      %v815 = vrot.slane %v207, %v814
      %v832 = vunpack.c.l.b16 %v796
      %v833 = vunpack.c.l.b16 %v797
      %v834 = vunpack.c.l.b16 %v798
      %v835 = vunpack.c.l.b16 %v799
      %v836 = vunpack.c.l.b16 %v800
      %v837 = vunpack.c.l.b16 %v801
      %v838 = vunpack.c.l.b16 %v802
      %v839 = vunpack.c.l.b16 %v803
      %v840 = vunpack.c.l.b16 %v804
      %v841 = vunpack.c.l.b16 %v805
      %v842 = vunpack.c.l.b16 %v806
      %v843 = vunpack.c.l.b16 %v807
      %v844 = vunpack.c.l.b16 %v808
      %v845 = vunpack.c.l.b16 %v809
      %v846 = vunpack.c.l.b16 %v810
      %v847 = vunpack.c.l.b16 %v811
      %v848 = vpack.c.b16 %v833, %v832
      %v849 = vpack.c.b16 %v835, %v834
      %v850 = vpack.c.b16 %v837, %v836
      %v851 = vpack.c.b16 %v839, %v838
      %v852 = vpack.c.b16 %v841, %v840
      %v853 = vpack.c.b16 %v843, %v842
      %v854 = vpack.c.b16 %v845, %v844
      %v855 = vpack.c.b16 %v847, %v846
      %864 = vmatprep.subr.bf16.mxu0 0
      %865 = vmatpush1.bf16.msra.mxu0 %v855
      %866 = vmatprep.subr.bf16.mxu0 0
      %867 = vmatpush1.bf16.msra.mxu0 %v854
      %868 = vmatprep.subr.bf16.mxu0 0
      %869 = vmatpush1.bf16.msra.mxu0 %v853
      %870 = vmatprep.subr.bf16.mxu0 0
      %871 = vmatpush1.bf16.msra.mxu0 %v852
      %872 = vmatprep.subr.bf16.mxu0 0
      %873 = vmatpush1.bf16.msra.mxu0 %v851
      %874 = vmatprep.subr.bf16.mxu0 0
      %875 = vmatpush1.bf16.msra.mxu0 %v850
      %876 = vmatprep.subr.bf16.mxu0 0
      %877 = vmatpush1.bf16.msra.mxu0 %v849
      %878 = vmatprep.subr.bf16.mxu0 0
      %879 = vmatpush1.bf16.msra.mxu0 %v848
      %880 = vmatprep.subr.bf16.mxu0 0
      %881 = vmatpush2.bf16.msra.mxu0 0
      %882 = vmatprep.subr.bf16.mxu0 0
      %883 = vmatpush2.bf16.msra.mxu0 0
      %884 = vmatprep.subr.bf16.mxu0 0
      %885 = vmatpush2.bf16.msra.mxu0 0
      %886 = vmatprep.subr.bf16.mxu0 0
      %887 = vmatpush2.bf16.msra.mxu0 0
      %888 = vmatprep.subr.bf16.mxu0 0
      %889 = vmatpush2.bf16.msra.mxu0 0
      %890 = vmatprep.subr.bf16.mxu0 0
      %891 = vmatpush2.bf16.msra.mxu0 0
      %892 = vmatprep.subr.bf16.mxu0 0
      %893 = vmatpush2.bf16.msra.mxu0 0
      %894 = vmatprep.subr.bf16.mxu0 0
      %895 = vmatpush2.bf16.msra.mxu0 0
      %896 = vmatprep.mubr.bf16.mxu0 0
      %897 = vmatmul.mubr.bf16.gmra.mxu0 %v786
      %v898 = vpop.f32.mrf.mxu0
      %v899 = vadd.f32 %v815, %v898
      %v900 = vpop.f32.mrf.mxu0
      %v901 = vpop.f32.mrf.mxu0
      %v902 = vadd.f32 %v815, %v901
      %v903 = vpop.f32.mrf.mxu0
      %904 = vmatprep.mubr.bf16.mxu0 0
      %905 = vmatmul.mubr.bf16.gmra.mxu0 %v787
      %v906 = vpop.f32.mrf.mxu0
      %v907 = vadd.f32 %v815, %v906
      %v908 = vpop.f32.mrf.mxu0
      %v909 = vpop.f32.mrf.mxu0
      %v910 = vadd.f32 %v815, %v909
      %v911 = vpop.f32.mrf.mxu0
      %912 = vmatprep.mubr.bf16.mxu0 0
      %913 = vmatmul.mubr.bf16.gmra.mxu0 %v788
      %v914 = vpop.f32.mrf.mxu0
      %v915 = vadd.f32 %v815, %v914
      %v916 = vpop.f32.mrf.mxu0
      %v917 = vpop.f32.mrf.mxu0
      %v918 = vadd.f32 %v815, %v917
      %v919 = vpop.f32.mrf.mxu0
      %920 = vmatprep.mubr.bf16.mxu0 0
      %921 = vmatmul.mubr.bf16.gmra.mxu0 %v789
      %v922 = vpop.f32.mrf.mxu0
      %v923 = vadd.f32 %v815, %v922
      %v924 = vpop.f32.mrf.mxu0
      %v925 = vpop.f32.mrf.mxu0
      %v926 = vadd.f32 %v815, %v925
      %v927 = vpop.f32.mrf.mxu0
      %928 = vmatprep.mubr.bf16.mxu0 0
      %929 = vmatmul.mubr.bf16.gmra.mxu0 %v790
      %v930 = vpop.f32.mrf.mxu0
      %v931 = vadd.f32 %v815, %v930
      %v932 = vpop.f32.mrf.mxu0
      %v933 = vpop.f32.mrf.mxu0
      %v934 = vadd.f32 %v815, %v933
      %v935 = vpop.f32.mrf.mxu0
      %936 = vmatprep.mubr.bf16.mxu0 0
      %937 = vmatmul.mubr.bf16.gmra.mxu0 %v791
      %v938 = vpop.f32.mrf.mxu0
      %v939 = vadd.f32 %v815, %v938
      %v940 = vpop.f32.mrf.mxu0
      %v941 = vpop.f32.mrf.mxu0
      %v942 = vadd.f32 %v815, %v941
      %v943 = vpop.f32.mrf.mxu0
      %944 = vmatprep.mubr.bf16.mxu0 0
      %945 = vmatmul.mubr.bf16.gmra.mxu0 %v792
      %v946 = vpop.f32.mrf.mxu0
      %v947 = vadd.f32 %v815, %v946
      %v948 = vpop.f32.mrf.mxu0
      %v949 = vpop.f32.mrf.mxu0
      %v950 = vadd.f32 %v815, %v949
      %v951 = vpop.f32.mrf.mxu0
      %952 = vmatprep.mubr.bf16.mxu0 0
      %953 = vmatmul.mubr.bf16.gmra.mxu0 %v793
      %v954 = vpop.f32.mrf.mxu0
      %v955 = vadd.f32 %v815, %v954
      %v956 = vpop.f32.mrf.mxu0
      %v957 = vpop.f32.mrf.mxu0
      %v958 = vadd.f32 %v815, %v957
      %v959 = vpop.f32.mrf.mxu0
      %960 = vmatprep.mubr.bf16.mxu0 0
      %961 = vmatmul.mubr.bf16.gmra.mxu0 %v794
      %v962 = vpop.f32.mrf.mxu0
      %v963 = vadd.f32 %v815, %v962
      %v964 = vpop.f32.mrf.mxu0
      %v965 = vpop.f32.mrf.mxu0
      %v966 = vadd.f32 %v815, %v965
      %v967 = vpop.f32.mrf.mxu0
      %968 = vmatprep.mubr.bf16.mxu0 0
      %969 = vmatmul.mubr.bf16.gmra.mxu0 %v795
      %v970 = vpop.f32.mrf.mxu0
      %v971 = vadd.f32 %v815, %v970
      %v972 = vpop.f32.mrf.mxu0
      %v973 = vpop.f32.mrf.mxu0
      %v974 = vpop.f32.mrf.mxu0
      %975 = vdwg.mxu0
      %976 = vadd.xlane.f32.xlu0 %v899
      %v977 = vpop.xlane.xlu0 %976
      %978 = vadd.xlane.f32.xlu0 %v902
      %v979 = vpop.xlane.xlu0 %978
      %980 = vadd.xlane.f32.xlu0 %v907
      %v981 = vpop.xlane.xlu0 %980
      %982 = vadd.xlane.f32.xlu0 %v910
      %v983 = vpop.xlane.xlu0 %982
      %984 = vadd.xlane.f32.xlu0 %v915
      %v985 = vpop.xlane.xlu0 %984
      %986 = vadd.xlane.f32.xlu0 %v918
      %v987 = vpop.xlane.xlu0 %986
      %988 = vadd.xlane.f32.xlu0 %v923
      %v989 = vpop.xlane.xlu0 %988
      %990 = vadd.xlane.f32.xlu0 %v926
      %v991 = vpop.xlane.xlu0 %990
      %992 = vadd.xlane.f32.xlu0 %v931
      %v993 = vpop.xlane.xlu0 %992
      %994 = vadd.xlane.f32.xlu0 %v934
      %v995 = vpop.xlane.xlu0 %994
      %996 = vadd.xlane.f32.xlu0 %v939
      %v997 = vpop.xlane.xlu0 %996
      %998 = vadd.xlane.f32.xlu0 %v942
      %v999 = vpop.xlane.xlu0 %998
      %1000 = vadd.xlane.f32.xlu0 %v947
      %v1001 = vpop.xlane.xlu0 %1000
      %1002 = vadd.xlane.f32.xlu0 %v950
      %v1003 = vpop.xlane.xlu0 %1002
      %1004 = vadd.xlane.f32.xlu0 %v955
      %v1005 = vpop.xlane.xlu0 %1004
      %1006 = vadd.xlane.f32.xlu0 %v958
      %v1007 = vpop.xlane.xlu0 %1006
      %1008 = vadd.xlane.f32.xlu0 %v963
      %v1009 = vpop.xlane.xlu0 %1008
      %1010 = vadd.xlane.f32.xlu0 %v966
      %v1011 = vpop.xlane.xlu0 %1010
      %1012 = vadd.xlane.f32.xlu0 %v971
      %v1013 = vpop.xlane.xlu0 %1012
      %v1014 = vmul.f32 %v977, 0.025
      %v1015 = vmul.f32 %v979, 0.025
      %v1016 = vmul.f32 %v981, 0.025
      %v1017 = vmul.f32 %v983, 0.025
      %v1018 = vmul.f32 %v985, 0.025
      %v1019 = vmul.f32 %v987, 0.025
      %v1020 = vmul.f32 %v989, 0.025
      %v1021 = vmul.f32 %v991, 0.025
      %v1022 = vmul.f32 %v993, 0.025
      %v1023 = vmul.f32 %v995, 0.025
      %v1024 = vmul.f32 %v997, 0.025
      %v1025 = vmul.f32 %v999, 0.025
      %v1026 = vmul.f32 %v1001, 0.025
      %v1027 = vmul.f32 %v1003, 0.025
      %v1028 = vmul.f32 %v1005, 0.025
      %v1029 = vmul.f32 %v1007, 0.025
      %v1030 = vmul.f32 %v1009, 0.025
      %v1031 = vmul.f32 %v1011, 0.025
      %v1032 = vmul.f32 %v1013, 0.025
      %v1033 = vsub.f32 %v899, %v1014
      %v1034 = vsub.f32 %v902, %v1015
      %v1035 = vsub.f32 %v907, %v1016
      %v1036 = vsub.f32 %v910, %v1017
      %v1037 = vsub.f32 %v915, %v1018
      %v1038 = vsub.f32 %v918, %v1019
      %v1039 = vsub.f32 %v923, %v1020
      %v1040 = vsub.f32 %v926, %v1021
      %v1041 = vsub.f32 %v931, %v1022
      %v1042 = vsub.f32 %v934, %v1023
      %v1043 = vsub.f32 %v939, %v1024
      %v1044 = vsub.f32 %v942, %v1025
      %v1045 = vsub.f32 %v947, %v1026
      %v1046 = vsub.f32 %v950, %v1027
      %v1047 = vsub.f32 %v955, %v1028
      %v1048 = vsub.f32 %v958, %v1029
      %v1049 = vsub.f32 %v963, %v1030
      %v1050 = vsub.f32 %v966, %v1031
      %v1051 = vsub.f32 %v971, %v1032
      %v1052 = vmul.f32 %v1033, %v206
      %v1053 = vmul.f32 %v1034, %v206
      %v1054 = vmul.f32 %v1035, %v206
      %v1055 = vmul.f32 %v1036, %v206
      %v1056 = vmul.f32 %v1037, %v206
      %v1057 = vmul.f32 %v1038, %v206
      %v1058 = vmul.f32 %v1039, %v206
      %v1059 = vmul.f32 %v1040, %v206
      %v1060 = vmul.f32 %v1041, %v206
      %v1061 = vmul.f32 %v1042, %v206
      %v1062 = vmul.f32 %v1043, %v206
      %v1063 = vmul.f32 %v1044, %v206
      %v1064 = vmul.f32 %v1045, %v206
      %v1065 = vmul.f32 %v1046, %v206
      %v1066 = vmul.f32 %v1047, %v206
      %v1067 = vmul.f32 %v1048, %v206
      %v1068 = vmul.f32 %v1049, %v206
      %v1069 = vmul.f32 %v1050, %v206
      %v1070 = vmul.f32 %v1051, %v206
      %v1071 = vmul.f32 %v1052, %v1052
      %v1072 = vmul.f32 %v1053, %v1053
      %v1073 = vmul.f32 %v1054, %v1054
      %v1074 = vmul.f32 %v1055, %v1055
      %v1075 = vmul.f32 %v1056, %v1056
      %v1076 = vmul.f32 %v1057, %v1057
      %v1077 = vmul.f32 %v1058, %v1058
      %v1078 = vmul.f32 %v1059, %v1059
      %v1079 = vmul.f32 %v1060, %v1060
      %v1080 = vmul.f32 %v1061, %v1061
      %v1081 = vmul.f32 %v1062, %v1062
      %v1082 = vmul.f32 %v1063, %v1063
      %v1083 = vmul.f32 %v1064, %v1064
      %v1084 = vmul.f32 %v1065, %v1065
      %v1085 = vmul.f32 %v1066, %v1066
      %v1086 = vmul.f32 %v1067, %v1067
      %v1087 = vmul.f32 %v1068, %v1068
      %v1088 = vmul.f32 %v1069, %v1069
      %v1089 = vmul.f32 %v1070, %v1070
      %1090 = vadd.xlane.f32.xlu0 %v1071
      %v1091 = vpop.xlane.xlu0 %1090
      %1092 = vadd.xlane.f32.xlu0 %v1072
      %v1093 = vpop.xlane.xlu0 %1092
      %1094 = vadd.xlane.f32.xlu0 %v1073
      %v1095 = vpop.xlane.xlu0 %1094
      %1096 = vadd.xlane.f32.xlu0 %v1074
      %v1097 = vpop.xlane.xlu0 %1096
      %1098 = vadd.xlane.f32.xlu0 %v1075
      %v1099 = vpop.xlane.xlu0 %1098
      %1100 = vadd.xlane.f32.xlu0 %v1076
      %v1101 = vpop.xlane.xlu0 %1100
      %1102 = vadd.xlane.f32.xlu0 %v1077
      %v1103 = vpop.xlane.xlu0 %1102
      %1104 = vadd.xlane.f32.xlu0 %v1078
      %v1105 = vpop.xlane.xlu0 %1104
      %1106 = vadd.xlane.f32.xlu0 %v1079
      %v1107 = vpop.xlane.xlu0 %1106
      %1108 = vadd.xlane.f32.xlu0 %v1080
      %v1109 = vpop.xlane.xlu0 %1108
      %1110 = vadd.xlane.f32.xlu0 %v1081
      %v1111 = vpop.xlane.xlu0 %1110
      %1112 = vadd.xlane.f32.xlu0 %v1082
      %v1113 = vpop.xlane.xlu0 %1112
      %1114 = vadd.xlane.f32.xlu0 %v1083
      %v1115 = vpop.xlane.xlu0 %1114
      %1116 = vadd.xlane.f32.xlu0 %v1084
      %v1117 = vpop.xlane.xlu0 %1116
      %1118 = vadd.xlane.f32.xlu0 %v1085
      %v1119 = vpop.xlane.xlu0 %1118
      %1120 = vadd.xlane.f32.xlu0 %v1086
      %v1121 = vpop.xlane.xlu0 %1120
      %1122 = vadd.xlane.f32.xlu0 %v1087
      %v1123 = vpop.xlane.xlu0 %1122
      %1124 = vadd.xlane.f32.xlu0 %v1088
      %v1125 = vpop.xlane.xlu0 %1124
      %1126 = vadd.xlane.f32.xlu0 %v1089
      %v1127 = vpop.xlane.xlu0 %1126
      %v1128 = vmul.f32 %v1091, 0.025
      %v1129 = vmul.f32 %v1093, 0.025
      %v1130 = vmul.f32 %v1095, 0.025
      %v1131 = vmul.f32 %v1097, 0.025
      %v1132 = vmul.f32 %v1099, 0.025
      %v1133 = vmul.f32 %v1101, 0.025
      %v1134 = vmul.f32 %v1103, 0.025
      %v1135 = vmul.f32 %v1105, 0.025
      %v1136 = vmul.f32 %v1107, 0.025
      %v1137 = vmul.f32 %v1109, 0.025
      %v1138 = vmul.f32 %v1111, 0.025
      %v1139 = vmul.f32 %v1113, 0.025
      %v1140 = vmul.f32 %v1115, 0.025
      %v1141 = vmul.f32 %v1117, 0.025
      %v1142 = vmul.f32 %v1119, 0.025
      %v1143 = vmul.f32 %v1121, 0.025
      %v1144 = vmul.f32 %v1123, 0.025
      %v1145 = vmul.f32 %v1125, 0.025
      %v1146 = vmul.f32 %v1127, 0.025
      %v1147 = vadd.f32 %v1128, 1e-05
      %v1148 = vadd.f32 %v1129, 1e-05
      %v1149 = vadd.f32 %v1130, 1e-05
      %v1150 = vadd.f32 %v1131, 1e-05
      %v1151 = vadd.f32 %v1132, 1e-05
      %v1152 = vadd.f32 %v1133, 1e-05
      %v1153 = vadd.f32 %v1134, 1e-05
      %v1154 = vadd.f32 %v1135, 1e-05
      %v1155 = vadd.f32 %v1136, 1e-05
      %v1156 = vadd.f32 %v1137, 1e-05
      %v1157 = vadd.f32 %v1138, 1e-05
      %v1158 = vadd.f32 %v1139, 1e-05
      %v1159 = vadd.f32 %v1140, 1e-05
      %v1160 = vadd.f32 %v1141, 1e-05
      %v1161 = vadd.f32 %v1142, 1e-05
      %v1162 = vadd.f32 %v1143, 1e-05
      %v1163 = vadd.f32 %v1144, 1e-05
      %v1164 = vadd.f32 %v1145, 1e-05
      %v1165 = vadd.f32 %v1146, 1e-05
      %v1166 = vrsqrt.pop %v1147
      %v1167 = vrsqrt.pop %v1148
      %v1168 = vrsqrt.pop %v1149
      %v1169 = vrsqrt.pop %v1150
      %v1170 = vrsqrt.pop %v1151
      %v1171 = vrsqrt.pop %v1152
      %v1172 = vrsqrt.pop %v1153
      %v1173 = vrsqrt.pop %v1154
      %v1174 = vrsqrt.pop %v1155
      %v1175 = vrsqrt.pop %v1156
      %v1176 = vrsqrt.pop %v1157
      %v1177 = vrsqrt.pop %v1158
      %v1178 = vrsqrt.pop %v1159
      %v1179 = vrsqrt.pop %v1160
      %v1180 = vrsqrt.pop %v1161
      %v1181 = vrsqrt.pop %v1162
      %v1182 = vrsqrt.pop %v1163
      %v1183 = vrsqrt.pop %v1164
      %v1184 = vrsqrt.pop %v1165
      %v1185 = vmul.f32 %v1052, %v1166
      %v1186 = vmul.f32 %v1053, %v1167
      %v1187 = vmul.f32 %v1054, %v1168
      %v1188 = vmul.f32 %v1055, %v1169
      %v1189 = vmul.f32 %v1056, %v1170
      %v1190 = vmul.f32 %v1057, %v1171
      %v1191 = vmul.f32 %v1058, %v1172
      %v1192 = vmul.f32 %v1059, %v1173
      %v1193 = vmul.f32 %v1060, %v1174
      %v1194 = vmul.f32 %v1061, %v1175
      %v1195 = vmul.f32 %v1062, %v1176
      %v1196 = vmul.f32 %v1063, %v1177
      %v1197 = vmul.f32 %v1064, %v1178
      %v1198 = vmul.f32 %v1065, %v1179
      %v1199 = vmul.f32 %v1066, %v1180
      %v1200 = vmul.f32 %v1067, %v1181
      %v1201 = vmul.f32 %v1068, %v1182
      %v1202 = vmul.f32 %v1069, %v1183
      %v1203 = vmul.f32 %v1070, %v1184
      %v1204 = vlaneseq
      %v1205 = vshrl.u32 %v1204, 7
      %v1206 = vsub.s32 4, %v1205
      %v1207 = vrot.slane %v207, %v1206
      %v1208 = vmul.f32 %v1185, %v1207
      %v1209 = vmul.f32 %v1186, %v1207
      %v1210 = vmul.f32 %v1187, %v1207
      %v1211 = vmul.f32 %v1188, %v1207
      %v1212 = vmul.f32 %v1189, %v1207
      %v1213 = vmul.f32 %v1190, %v1207
      %v1214 = vmul.f32 %v1191, %v1207
      %v1215 = vmul.f32 %v1192, %v1207
      %v1216 = vmul.f32 %v1193, %v1207
      %v1217 = vmul.f32 %v1194, %v1207
      %v1218 = vmul.f32 %v1195, %v1207
      %v1219 = vmul.f32 %v1196, %v1207
      %v1220 = vmul.f32 %v1197, %v1207
      %v1221 = vmul.f32 %v1198, %v1207
      %v1222 = vmul.f32 %v1199, %v1207
      %v1223 = vmul.f32 %v1200, %v1207
      %v1224 = vmul.f32 %v1201, %v1207
      %v1225 = vmul.f32 %v1202, %v1207
      %v1226 = vmul.f32 %v1203, %v1207
      %v1227 = vlaneseq
      %v1228 = vshrl.u32 %v1227, 7
      %v1229 = vsub.s32 5, %v1228
      %v1230 = vrot.slane %v207, %v1229
      %v1231 = vadd.f32 %v1208, %v1230
      %v1232 = vadd.f32 %v1209, %v1230
      %v1233 = vadd.f32 %v1210, %v1230
      %v1234 = vadd.f32 %v1211, %v1230
      %v1235 = vadd.f32 %v1212, %v1230
      %v1236 = vadd.f32 %v1213, %v1230
      %v1237 = vadd.f32 %v1214, %v1230
      %v1238 = vadd.f32 %v1215, %v1230
      %v1239 = vadd.f32 %v1216, %v1230
      %v1240 = vadd.f32 %v1217, %v1230
      %v1241 = vadd.f32 %v1218, %v1230
      %v1242 = vadd.f32 %v1219, %v1230
      %v1243 = vadd.f32 %v1220, %v1230
      %v1244 = vadd.f32 %v1221, %v1230
      %v1245 = vadd.f32 %v1222, %v1230
      %v1246 = vadd.f32 %v1223, %v1230
      %v1247 = vadd.f32 %v1224, %v1230
      %v1248 = vadd.f32 %v1225, %v1230
      %v1249 = vadd.f32 %v1226, %v1230
      %v1250 = vmul.f32 %v1231, 0.5
      %v1251 = vmul.f32 %v1232, 0.5
      %v1252 = vmul.f32 %v1233, 0.5
      %v1253 = vmul.f32 %v1234, 0.5
      %v1254 = vmul.f32 %v1235, 0.5
      %v1255 = vmul.f32 %v1236, 0.5
      %v1256 = vmul.f32 %v1237, 0.5
      %v1257 = vmul.f32 %v1238, 0.5
      %v1258 = vmul.f32 %v1239, 0.5
      %v1259 = vmul.f32 %v1240, 0.5
      %v1260 = vmul.f32 %v1241, 0.5
      %v1261 = vmul.f32 %v1242, 0.5
      %v1262 = vmul.f32 %v1243, 0.5
      %v1263 = vmul.f32 %v1244, 0.5
      %v1264 = vmul.f32 %v1245, 0.5
      %v1265 = vmul.f32 %v1246, 0.5
      %v1266 = vmul.f32 %v1247, 0.5
      %v1267 = vmul.f32 %v1248, 0.5
      %v1268 = vmul.f32 %v1249, 0.5
      %v1269 = vmul.f32 %v1231, 0.70710677
      %v1270 = vmul.f32 %v1232, 0.70710677
      %v1271 = vmul.f32 %v1233, 0.70710677
      %v1272 = vmul.f32 %v1234, 0.70710677
      %v1273 = vmul.f32 %v1235, 0.70710677
      %v1274 = vmul.f32 %v1236, 0.70710677
      %v1275 = vmul.f32 %v1237, 0.70710677
      %v1276 = vmul.f32 %v1238, 0.70710677
      %v1277 = vmul.f32 %v1239, 0.70710677
      %v1278 = vmul.f32 %v1240, 0.70710677
      %v1279 = vmul.f32 %v1241, 0.70710677
      %v1280 = vmul.f32 %v1242, 0.70710677
      %v1281 = vmul.f32 %v1243, 0.70710677
      %v1282 = vmul.f32 %v1244, 0.70710677
      %v1283 = vmul.f32 %v1245, 0.70710677
      %v1284 = vmul.f32 %v1246, 0.70710677
      %v1285 = vmul.f32 %v1247, 0.70710677
      %v1286 = vmul.f32 %v1248, 0.70710677
      %v1287 = vmul.f32 %v1249, 0.70710677
      %v1288 = verf.f32.pop %v1269
      %v1289 = verf.f32.pop %v1270
      %v1290 = verf.f32.pop %v1271
      %v1291 = verf.f32.pop %v1272
      %v1292 = verf.f32.pop %v1273
      %v1293 = verf.f32.pop %v1274
      %v1294 = verf.f32.pop %v1275
      %v1295 = verf.f32.pop %v1276
      %v1296 = verf.f32.pop %v1277
      %v1297 = verf.f32.pop %v1278
      %v1298 = verf.f32.pop %v1279
      %v1299 = verf.f32.pop %v1280
      %v1300 = verf.f32.pop %v1281
      %v1301 = verf.f32.pop %v1282
      %v1302 = verf.f32.pop %v1283
      %v1303 = verf.f32.pop %v1284
      %v1304 = verf.f32.pop %v1285
      %v1305 = verf.f32.pop %v1286
      %v1306 = verf.f32.pop %v1287
      %v1307 = vadd.f32 %v1288, 1.0
      %v1308 = vadd.f32 %v1289, 1.0
      %v1309 = vadd.f32 %v1290, 1.0
      %v1310 = vadd.f32 %v1291, 1.0
      %v1311 = vadd.f32 %v1292, 1.0
      %v1312 = vadd.f32 %v1293, 1.0
      %v1313 = vadd.f32 %v1294, 1.0
      %v1314 = vadd.f32 %v1295, 1.0
      %v1315 = vadd.f32 %v1296, 1.0
      %v1316 = vadd.f32 %v1297, 1.0
      %v1317 = vadd.f32 %v1298, 1.0
      %v1318 = vadd.f32 %v1299, 1.0
      %v1319 = vadd.f32 %v1300, 1.0
      %v1320 = vadd.f32 %v1301, 1.0
      %v1321 = vadd.f32 %v1302, 1.0
      %v1322 = vadd.f32 %v1303, 1.0
      %v1323 = vadd.f32 %v1304, 1.0
      %v1324 = vadd.f32 %v1305, 1.0
      %v1325 = vadd.f32 %v1306, 1.0
      %v1326 = vmul.f32 %v1250, %v1307
      %v1327 = vmul.f32 %v1251, %v1308
      %v1328 = vmul.f32 %v1252, %v1309
      %v1329 = vmul.f32 %v1253, %v1310
      %v1330 = vmul.f32 %v1254, %v1311
      %v1331 = vmul.f32 %v1255, %v1312
      %v1332 = vmul.f32 %v1256, %v1313
      %v1333 = vmul.f32 %v1257, %v1314
      %v1334 = vmul.f32 %v1258, %v1315
      %v1335 = vmul.f32 %v1259, %v1316
      %v1336 = vmul.f32 %v1260, %v1317
      %v1337 = vmul.f32 %v1261, %v1318
      %v1338 = vmul.f32 %v1262, %v1319
      %v1339 = vmul.f32 %v1263, %v1320
      %v1340 = vmul.f32 %v1264, %v1321
      %v1341 = vmul.f32 %v1265, %v1322
      %v1342 = vmul.f32 %v1266, %v1323
      %v1343 = vmul.f32 %v1267, %v1324
      %v1344 = vmul.f32 %v1268, %v1325
      %1345 = vst [vmem:[%s199] sm:$0xff] %v1326
      %1346 = vst [vmem:[%s199 + $0x8] sm:$0xff] %v1327
      %1347 = vst [vmem:[%s199 + $0x10] sm:$0xff] %v1328
      %1348 = vst [vmem:[%s199 + $0x18] sm:$0xff] %v1329
      %1349 = vst [vmem:[%s199 + $0x20] sm:$0xff] %v1330
      %1350 = vst [vmem:[%s199 + $0x28] sm:$0xff] %v1331
      %1351 = vst [vmem:[%s199 + $0x30] sm:$0xff] %v1332
      %1352 = vst [vmem:[%s199 + $0x38] sm:$0xff] %v1333
      %1353 = vst [vmem:[%s199 + $0x40] sm:$0xff] %v1334
      %1354 = vst [vmem:[%s199 + $0x48] sm:$0xff] %v1335
      %1355 = vst [vmem:[%s199 + $0x50] sm:$0xff] %v1336
      %1356 = vst [vmem:[%s199 + $0x58] sm:$0xff] %v1337
      %1357 = vst [vmem:[%s199 + $0x60] sm:$0xff] %v1338
      %1358 = vst [vmem:[%s199 + $0x68] sm:$0xff] %v1339
      %1359 = vst [vmem:[%s199 + $0x70] sm:$0xff] %v1340
      %1360 = vst [vmem:[%s199 + $0x78] sm:$0xff] %v1341
      %1361 = vst [vmem:[%s199 + $0x80] sm:$0xff] %v1342
      %1362 = vst [vmem:[%s199 + $0x88] sm:$0xff] %v1343
      %1363 = vst [vmem:[%s199 + $0x90] sm:$0xff] %v1344
      %s1364 = smul.u32 19, %s15
      %p1365 = scmp.lt.s32.totalorder %s1364, 37
      %s1366 = scalar_select %p1365, %s1364, 37
      %s1367 = smul.addr %s1366, 8
      %s1368 = scalar_lea.vmem %s4, %s1367
      // Predicated region
      $region37: #{batch_encoder_mlp_forward.1} parent=35 // pred_check
        %p1369 = pneg %p122
      $region38: #{batch_encoder_mlp_forward.1} parent=35 // pred_check_branch
        %1371 = sbr.rel (%p1369) target = $region40
      $region39: #{batch_encoder_mlp_forward.1} parent=35 // pred_region
        %s1372 = smul.u32 19, %s15
      $region40: #{batch_encoder_mlp_forward.1} parent=35 // pred_fallthru
        _
    $region36: #{batch_encoder_mlp_forward.1} parent=5 // pred_fallthru
      _
    %p1373 = scmp.le.s32.totalorder 2, %s10
    // Predicated region
    $region41: #{batch_encoder_mlp_forward.1} parent=5 // pred_check
      %p1374 = pneg %p1373
    $region42: #{batch_encoder_mlp_forward.1} parent=5 // pred_check_branch
      %1376 = sbr.rel (%p1374) target = $region44
    $region43: #{batch_encoder_mlp_forward.1} parent=5 // pred_region
      %s1377 = ssub.s32 %s10, 2
      // Predicated region
      $region45: #{batch_encoder_mlp_forward.1} parent=43 // pred_check
        %p1378 = pneg %p128
      $region46: #{batch_encoder_mlp_forward.1} parent=43 // pred_check_branch
        %1380 = sbr.rel (%p1378) target = $region48
      $region47: #{batch_encoder_mlp_forward.1} parent=43 // pred_region
        %s1381 = smul.u32 19, %s16
        %p1382 = scmp.lt.s32.totalorder %s1381, 37
        %s1383 = scalar_select %p1382, %s1381, 37
        %s1384 = smul.addr %s1383, 8
        %s1385 = scalar_lea.vmem %s4, %s1384
      $region48: #{batch_encoder_mlp_forward.1} parent=43 // pred_fallthru
        _
    $region44: #{batch_encoder_mlp_forward.1} parent=5 // pred_fallthru
      _
  $region6: #{batch_encoder_mlp_forward.1} parent=0 // loop_footer
    %s14 = sadd.s32 1, %s10
  $region7: #{batch_encoder_mlp_forward.1} parent=0 // loop_footer_branch
    %9 = sbr.rel target = $region3
  $region8: #{batch_encoder_mlp_forward.1} parent=0 // loop_exit
    _

</llo_original>
